<compile_context>
chip_gen: v7x
topology: tpu7x:2x2x1
jax: 0.10.0
libtpu: 0.0.40
codegen_flags: <defaults>
</compile_context>

<pallas_src>
import functools
import math

import numpy as np
import jax
import jax.numpy as jnp
from jax import lax
from jax.experimental import pallas as pl
from jax.experimental.pallas import tpu as pltpu


# ---------------------------------------------------------------------------
# Pallas kernel: one (image, row-tile) per grid step.
# ---------------------------------------------------------------------------
def _epw_kernel(x_ref, w_ref, bias_ref, alpha_ref, wts_ref, o_ref, *, wp):
    # x_ref    : (1, 1, TILE_S + HALO, Cin)  flattened (padded-rows * padded-width)
    #            slab; tap (dy, dx) lives at flat offset dy*wp + dx.
    # w_ref    : (9, Cin, Cout)              BN-scale-folded weights, k = 3*dy + dx
    # bias_ref : (1, Cout)                   folded BN bias
    # alpha_ref: (1, Cout)                   PReLU alpha
    # wts_ref  : (1, 1, Cout)                per-image sigmoid gate (precomputed)
    # o_ref    : (1, 1, TILE_S, Cout)
    tile_s = o_ref.shape[2]

    # Tap (0, 0) initializes the accumulator (no zero-fill + add).
    acc = jnp.dot(x_ref[0, 0, pl.ds(0, tile_s), :], w_ref[0],
                  preferred_element_type=jnp.float32)
    # Remaining 8 taps: same resident tile read at static flat offsets.
    for k in range(1, 9):
        dy, dx = divmod(k, 3)
        off = dy * wp + dx
        acc = acc + jnp.dot(x_ref[0, 0, pl.ds(off, tile_s), :], w_ref[k],
                            preferred_element_type=jnp.float32)

    # Epilogue: folded-BN bias + PReLU + channel-wise gate.
    y = acc + bias_ref[...]
    y = jnp.where(y >= 0.0, y, alpha_ref[...] * y)
    o_ref[0, 0] = (y * wts_ref[0]).astype(o_ref.dtype)


# ---------------------------------------------------------------------------
# Tile-size selection: largest divisor of H whose blocks fit a conservative
# VMEM budget (safe under the default scoped VMEM on v5e/v6e/v7x).
# ---------------------------------------------------------------------------
def _pick_tile_h(H, Wp, c_in, c_out, halo, itemsize=4,
                 vmem_budget_bytes=12 * 2 ** 20):
    best = None
    for t in range(1, H + 1):
        if H % t:
            continue
        tile_s = t * Wp
        if (tile_s % 8 != 0) and (t != H):
            continue  # keep the sublane dim of the blocks 8-aligned (perf)
        words = (2 * (tile_s + halo) * c_in        # double-buffered input slab
                 + 2 * tile_s * c_out              # double-buffered output
                 + 2 * 9 * c_in * c_out            # resident weights
                 + tile_s * c_out                  # f32 accumulator
                 + 4 * tile_s * max(c_in, c_out))  # slice copies / temporaries
        if words * itemsize <= vmem_budget_bytes:
            best = t
    return best if best is not None else 1


# ---------------------------------------------------------------------------
# Wrapper: layout glue + pallas_call
# ---------------------------------------------------------------------------
def efficient_pw_conv(x_nchw, params, *, tile_h=None):
    w1 = params["w1"]              # (Cin, Cout)
    w3 = params["w3_dense"]        # (9, Cin, Cout), k = 3*dy + dx
    bn_scale = params["bn_scale"]  # (1, Cout)
    bn_bias = params["bn_bias"]    # (1, Cout)
    alpha = params["prelu"]        # (1, Cout)

    N, Cin, H, W = x_nchw.shape
    Cout = w3.shape[-1]
    Wp = W + 2  # one pad column each side; 2 junk output columns/row discarded

    # ---- gating branch (tiny; hoisted out of the kernel, computed in f32) ----
    mean = jnp.mean(x_nchw.astype(jnp.float32), axis=(2, 3))        # (N, Cin)
    wts = jax.nn.sigmoid(mean @ w1.astype(jnp.float32))             # (N, Cout)
    wts = wts.reshape(N, 1, Cout)

    # ---- expansion-branch operands -------------------------------------------
    # TODO(synk): an NHWC end-to-end graph would remove this transpose and the
    # inverse transpose on the output (one HBM pass over the activation each).
    x_nhwc = jnp.transpose(x_nchw, (0, 2, 3, 1))
    x_pad = jnp.pad(x_nhwc, ((0, 0), (1, 1), (1, 1), (0, 0)))       # (N, H+2, Wp, Cin)
    x_flat = x_pad.reshape(N, (H + 2) * Wp, Cin)                    # single copy, no tap dup

    # Halo (in flattened positions) so taps dy<=2, dx<=2 of a tile's last rows
    # (including the junk columns) never read out of bounds; round up to 8.
    halo = ((2 * Wp + 2 + 7) // 8) * 8

    if tile_h is None:
        tile_h = _pick_tile_h(H, Wp, Cin, Cout, halo)
    assert H % tile_h == 0, (H, tile_h)
    num_tiles = H // tile_h
    tile_s = tile_h * Wp

    # Pad the flattened axis so the last slab's halo stays in bounds.
    need = H * Wp + halo
    extra = max(0, need - (H + 2) * Wp)
    x_flat = jnp.pad(x_flat, ((0, 0), (0, extra), (0, 0)))

    # Per-tile overlapping slabs (tile + halo).  XLA fuses the pad/stack chain
    # into a single copy pass of ~1x the activation size.
    slabs = jnp.stack(
        [x_flat[:, i * tile_s: i * tile_s + tile_s + halo, :]
         for i in range(num_tiles)], axis=1)         # (N, T, tile_s+halo, Cin)

    # BN scale folded into the 3x3 weights (per output channel).
    w3k = w3.astype(jnp.float32) * bn_scale                          # (9, Cin, Cout)

    kernel = functools.partial(_epw_kernel, wp=Wp)
    out = pl.pallas_call(
        kernel,
        out_shape=jax.ShapeDtypeStruct((N, num_tiles, tile_s, Cout), x_nchw.dtype),
        grid=(N, num_tiles),
        in_specs=[
            pl.BlockSpec((1, 1, tile_s + halo, Cin), lambda n, i: (n, i, 0, 0)),
            pl.BlockSpec((9, Cin, Cout), lambda n, i: (0, 0, 0)),
            pl.BlockSpec((1, Cout), lambda n, i: (0, 0)),
            pl.BlockSpec((1, Cout), lambda n, i: (0, 0)),
            pl.BlockSpec((1, 1, Cout), lambda n, i: (n, 0, 0)),
        ],
        out_specs=pl.BlockSpec((1, 1, tile_s, Cout), lambda n, i: (n, i, 0, 0)),
        compiler_params=pltpu.CompilerParams(
            dimension_semantics=("parallel", "parallel")),
    )(slabs, w3k, bn_bias, alpha, wts)

    # (N, T, tile_s, Cout) -> (N, H, Wp, Cout) -> drop the 2 junk columns -> NCHW.
    out = out.reshape(N, H, Wp, Cout)[:, :, :W, :]
    return jnp.transpose(out, (0, 3, 1, 2))


# ---------------------------------------------------------------------------
# Deterministic parameter construction (synthetic; mirrors module __init__).
# ---------------------------------------------------------------------------
def make_params(nin, nout, key):
    g = math.gcd(nin, nout)
    cin_g = nin // g
    cout_g = nout // g
    k1, k2, k3, k4, k5, k6 = jax.random.split(key, 6)

    # wt_layer 1x1 conv: torch shape (nout, nin, 1, 1) -> stored as (nin, nout)
    w1_torch = jax.random.normal(k1, (nout, nin), jnp.float32) * 0.3
    w1 = jnp.transpose(w1_torch, (1, 0))

    # grouped 3x3 conv: torch shape (nout, nin/g, 3, 3)
    wg = np.asarray(jax.random.normal(k2, (nout, cin_g, 3, 3), jnp.float32) * 0.2)

    # dense block-diagonal equivalent, laid out as (9, Cin, Cout), k = 3*kh + kw
    w_dense = np.zeros((3, 3, nin, nout), np.float32)
    for co in range(nout):
        gid = co // cout_g
        for cg in range(cin_g):
            ci = gid * cin_g + cg
            w_dense[:, :, ci, co] = wg[co, cg]
    w3_dense = jnp.asarray(w_dense.reshape(9, nin, nout))

    # BatchNorm (inference / running-stats) folded into scale & bias
    gamma = 1.0 + 0.1 * jax.random.normal(k3, (nout,), jnp.float32)
    beta = 0.1 * jax.random.normal(k4, (nout,), jnp.float32)
    run_mean = 0.1 * jax.random.normal(k5, (nout,), jnp.float32)
    run_var = jnp.abs(jax.random.normal(k6, (nout,), jnp.float32)) + 0.5
    eps = 1e-5
    bn_scale = gamma / jnp.sqrt(run_var + eps)
    bn_bias = beta - run_mean * bn_scale

    # PReLU per-channel alpha (torch default init 0.25)
    prelu = jnp.full((nout,), 0.25, jnp.float32)

    return {
        "w1": w1,
        "wg_torch": jnp.asarray(wg),     # kept for the reference impl
        "w3_dense": w3_dense,
        "bn_scale": bn_scale.reshape(1, nout),
        "bn_bias": bn_bias.reshape(1, nout),
        "prelu": prelu.reshape(1, nout),
        "groups": g,
    }


# ---------------------------------------------------------------------------
# Pure-JAX reference (mirrors the PyTorch forward exactly).
# ---------------------------------------------------------------------------
def reference_forward(x_nchw, params):
    w1 = params["w1"]                 # (Cin, Cout)
    wg = params["wg_torch"]           # (Cout, Cin/g, 3, 3)
    g = params["groups"]
    scale = params["bn_scale"][0]
    bias = params["bn_bias"][0]
    alpha = params["prelu"][0]

    # gating branch
    avg = jnp.mean(x_nchw, axis=(2, 3), keepdims=True)                 # (N, Cin, 1, 1)
    wts = jax.nn.sigmoid(jnp.einsum("ncij,co->noij", avg, w1))         # (N, Cout, 1, 1)

    # expansion branch: grouped 3x3 conv + BN + PReLU
    y = lax.conv_general_dilated(
        x_nchw, wg,
        window_strides=(1, 1), padding="SAME",
        dimension_numbers=("NCHW", "OIHW", "NCHW"),
        feature_group_count=g,
    )
    y = y * scale[None, :, None, None] + bias[None, :, None, None]
    y = jnp.where(y >= 0.0, y, alpha[None, :, None, None] * y)
    return y * wts


# ---------------------------------------------------------------------------
if __name__ == "__main__":
    key = jax.random.PRNGKey(0)

    configs = [
        # (N, Cin, Cout, H, W, tile_h)  -- tile_h=8 forces 2 spatial tiles/image
        # and exercises the cross-tile halo reads.
        (2, 4, 8, 16, 16, 8),
        # different gcd/groups; tile_h=None exercises the VMEM-aware picker
        (1, 8, 16, 8, 8, None),
    ]
    for (N, Cin, Cout, H, W, tile_h) in configs:
        kx, kp, key = jax.random.split(key, 3)
        x = jax.random.normal(kx, (N, Cin, H, W), jnp.float32)
        params = make_params(Cin, Cout, kp)

        out = jax.block_until_ready(efficient_pw_conv(x, params, tile_h=tile_h))
        ref = jax.block_until_ready(reference_forward(x, params))

        assert out.shape == (N, Cout, H, W), out.shape
        err = float(jnp.max(jnp.abs(out - ref)))
        assert jnp.allclose(out, ref, atol=1e-4, rtol=1e-4), err

    print("KERNEL_OK")
</pallas_src>

<mosaic_0001>
module attributes {stable_mosaic.version = 11 : i64} {
  func.func @_epw_kernel(%arg0: i32, %arg1: i32, %arg2: memref<1x1x184x4xf32, #tpu.memory_space<vmem>>, %arg3: memref<9x4x8xf32, #tpu.memory_space<vmem>>, %arg4: memref<1x8xf32, #tpu.memory_space<vmem>>, %arg5: memref<1x8xf32, #tpu.memory_space<vmem>>, %arg6: memref<1x1x8xf32, #tpu.memory_space<vmem>>, %arg7: memref<1x1x144x8xf32, #tpu.memory_space<vmem>>) attributes {dimension_semantics = [#tpu.dimension_semantics<parallel>, #tpu.dimension_semantics<parallel>], iteration_bounds = array<i64: 2, 2>, scalar_prefetch = 0 : i64, scratch_operands = 0 : i64, tpu.core_type = #tpu.core_type<tc>, window_params = [{transform_indices = @transform_0, window_bounds = array<i64: 1, 1, 184, 4>}, {pipeline_mode = #tpu.pipeline_mode<synchronous>, transform_indices = @transform_1, window_bounds = array<i64: 9, 4, 8>}, {pipeline_mode = #tpu.pipeline_mode<synchronous>, transform_indices = @transform_2, window_bounds = array<i64: 1, 8>}, {pipeline_mode = #tpu.pipeline_mode<synchronous>, transform_indices = @transform_3, window_bounds = array<i64: 1, 8>}, {transform_indices = @transform_4, window_bounds = array<i64: 1, 1, 8>}, {transform_indices = @transform_5, window_bounds = array<i64: 1, 1, 144, 8>}]} {
    %c0 = arith.constant 0 : index
    %c0_0 = arith.constant 0 : index
    %c0_1 = arith.constant 0 : index
    %c0_2 = arith.constant 0 : index
    %0 = vector.load %arg2[%c0, %c0_0, %c0_1, %c0_2] : memref<1x1x184x4xf32, #tpu.memory_space<vmem>>, vector<1x1x144x4xf32>
    %1 = vector.shape_cast %0 : vector<1x1x144x4xf32> to vector<144x4xf32>
    %c0_3 = arith.constant 0 : index
    %c0_4 = arith.constant 0 : index
    %c0_5 = arith.constant 0 : index
    %2 = vector.load %arg3[%c0_3, %c0_4, %c0_5] : memref<9x4x8xf32, #tpu.memory_space<vmem>>, vector<1x4x8xf32>
    %3 = vector.shape_cast %2 : vector<1x4x8xf32> to vector<4x8xf32>
    %cst = arith.constant dense<0.000000e+00> : vector<144x8xf32>
    %4 = tpu.matmul %1, %3, %cst {dimension_numbers = #tpu.dot_dimension_numbers<[1], [0], [0], [1], [0, 0, 1, 1], [], []>} : vector<144x4xf32>, vector<4x8xf32>, vector<144x8xf32> -> vector<144x8xf32>
    %c0_6 = arith.constant 0 : index
    %c0_7 = arith.constant 0 : index
    %c1 = arith.constant 1 : index
    %c0_8 = arith.constant 0 : index
    %5 = vector.load %arg2[%c0_6, %c0_7, %c1, %c0_8] : memref<1x1x184x4xf32, #tpu.memory_space<vmem>>, vector<1x1x144x4xf32>
    %6 = vector.shape_cast %5 : vector<1x1x144x4xf32> to vector<144x4xf32>
    %c1_9 = arith.constant 1 : index
    %c0_10 = arith.constant 0 : index
    %c0_11 = arith.constant 0 : index
    %7 = vector.load %arg3[%c1_9, %c0_10, %c0_11] : memref<9x4x8xf32, #tpu.memory_space<vmem>>, vector<1x4x8xf32>
    %8 = vector.shape_cast %7 : vector<1x4x8xf32> to vector<4x8xf32>
    %cst_12 = arith.constant dense<0.000000e+00> : vector<144x8xf32>
    %9 = tpu.matmul %6, %8, %cst_12 {dimension_numbers = #tpu.dot_dimension_numbers<[1], [0], [0], [1], [0, 0, 1, 1], [], []>} : vector<144x4xf32>, vector<4x8xf32>, vector<144x8xf32> -> vector<144x8xf32>
    %10 = arith.addf %4, %9 : vector<144x8xf32>
    %c0_13 = arith.constant 0 : index
    %c0_14 = arith.constant 0 : index
    %c2 = arith.constant 2 : index
    %c0_15 = arith.constant 0 : index
    %11 = vector.load %arg2[%c0_13, %c0_14, %c2, %c0_15] : memref<1x1x184x4xf32, #tpu.memory_space<vmem>>, vector<1x1x144x4xf32>
    %12 = vector.shape_cast %11 : vector<1x1x144x4xf32> to vector<144x4xf32>
    %c2_16 = arith.constant 2 : index
    %c0_17 = arith.constant 0 : index
    %c0_18 = arith.constant 0 : index
    %13 = vector.load %arg3[%c2_16, %c0_17, %c0_18] : memref<9x4x8xf32, #tpu.memory_space<vmem>>, vector<1x4x8xf32>
    %14 = vector.shape_cast %13 : vector<1x4x8xf32> to vector<4x8xf32>
    %cst_19 = arith.constant dense<0.000000e+00> : vector<144x8xf32>
    %15 = tpu.matmul %12, %14, %cst_19 {dimension_numbers = #tpu.dot_dimension_numbers<[1], [0], [0], [1], [0, 0, 1, 1], [], []>} : vector<144x4xf32>, vector<4x8xf32>, vector<144x8xf32> -> vector<144x8xf32>
    %16 = arith.addf %10, %15 : vector<144x8xf32>
    %c0_20 = arith.constant 0 : index
    %c0_21 = arith.constant 0 : index
    %c18 = arith.constant 18 : index
    %c0_22 = arith.constant 0 : index
    %17 = vector.load %arg2[%c0_20, %c0_21, %c18, %c0_22] : memref<1x1x184x4xf32, #tpu.memory_space<vmem>>, vector<1x1x144x4xf32>
    %18 = vector.shape_cast %17 : vector<1x1x144x4xf32> to vector<144x4xf32>
    %c3 = arith.constant 3 : index
    %c0_23 = arith.constant 0 : index
    %c0_24 = arith.constant 0 : index
    %19 = vector.load %arg3[%c3, %c0_23, %c0_24] : memref<9x4x8xf32, #tpu.memory_space<vmem>>, vector<1x4x8xf32>
    %20 = vector.shape_cast %19 : vector<1x4x8xf32> to vector<4x8xf32>
    %cst_25 = arith.constant dense<0.000000e+00> : vector<144x8xf32>
    %21 = tpu.matmul %18, %20, %cst_25 {dimension_numbers = #tpu.dot_dimension_numbers<[1], [0], [0], [1], [0, 0, 1, 1], [], []>} : vector<144x4xf32>, vector<4x8xf32>, vector<144x8xf32> -> vector<144x8xf32>
    %22 = arith.addf %16, %21 : vector<144x8xf32>
    %c0_26 = arith.constant 0 : index
    %c0_27 = arith.constant 0 : index
    %c19 = arith.constant 19 : index
    %c0_28 = arith.constant 0 : index
    %23 = vector.load %arg2[%c0_26, %c0_27, %c19, %c0_28] : memref<1x1x184x4xf32, #tpu.memory_space<vmem>>, vector<1x1x144x4xf32>
    %24 = vector.shape_cast %23 : vector<1x1x144x4xf32> to vector<144x4xf32>
    %c4 = arith.constant 4 : index
    %c0_29 = arith.constant 0 : index
    %c0_30 = arith.constant 0 : index
    %25 = vector.load %arg3[%c4, %c0_29, %c0_30] : memref<9x4x8xf32, #tpu.memory_space<vmem>>, vector<1x4x8xf32>
    %26 = vector.shape_cast %25 : vector<1x4x8xf32> to vector<4x8xf32>
    %cst_31 = arith.constant dense<0.000000e+00> : vector<144x8xf32>
    %27 = tpu.matmul %24, %26, %cst_31 {dimension_numbers = #tpu.dot_dimension_numbers<[1], [0], [0], [1], [0, 0, 1, 1], [], []>} : vector<144x4xf32>, vector<4x8xf32>, vector<144x8xf32> -> vector<144x8xf32>
    %28 = arith.addf %22, %27 : vector<144x8xf32>
    %c0_32 = arith.constant 0 : index
    %c0_33 = arith.constant 0 : index
    %c20 = arith.constant 20 : index
    %c0_34 = arith.constant 0 : index
    %29 = vector.load %arg2[%c0_32, %c0_33, %c20, %c0_34] : memref<1x1x184x4xf32, #tpu.memory_space<vmem>>, vector<1x1x144x4xf32>
    %30 = vector.shape_cast %29 : vector<1x1x144x4xf32> to vector<144x4xf32>
    %c5 = arith.constant 5 : index
    %c0_35 = arith.constant 0 : index
    %c0_36 = arith.constant 0 : index
    %31 = vector.load %arg3[%c5, %c0_35, %c0_36] : memref<9x4x8xf32, #tpu.memory_space<vmem>>, vector<1x4x8xf32>
    %32 = vector.shape_cast %31 : vector<1x4x8xf32> to vector<4x8xf32>
    %cst_37 = arith.constant dense<0.000000e+00> : vector<144x8xf32>
    %33 = tpu.matmul %30, %32, %cst_37 {dimension_numbers = #tpu.dot_dimension_numbers<[1], [0], [0], [1], [0, 0, 1, 1], [], []>} : vector<144x4xf32>, vector<4x8xf32>, vector<144x8xf32> -> vector<144x8xf32>
    %34 = arith.addf %28, %33 : vector<144x8xf32>
    %c0_38 = arith.constant 0 : index
    %c0_39 = arith.constant 0 : index
    %c36 = arith.constant 36 : index
    %c0_40 = arith.constant 0 : index
    %35 = vector.load %arg2[%c0_38, %c0_39, %c36, %c0_40] : memref<1x1x184x4xf32, #tpu.memory_space<vmem>>, vector<1x1x144x4xf32>
    %36 = vector.shape_cast %35 : vector<1x1x144x4xf32> to vector<144x4xf32>
    %c6 = arith.constant 6 : index
    %c0_41 = arith.constant 0 : index
    %c0_42 = arith.constant 0 : index
    %37 = vector.load %arg3[%c6, %c0_41, %c0_42] : memref<9x4x8xf32, #tpu.memory_space<vmem>>, vector<1x4x8xf32>
    %38 = vector.shape_cast %37 : vector<1x4x8xf32> to vector<4x8xf32>
    %cst_43 = arith.constant dense<0.000000e+00> : vector<144x8xf32>
    %39 = tpu.matmul %36, %38, %cst_43 {dimension_numbers = #tpu.dot_dimension_numbers<[1], [0], [0], [1], [0, 0, 1, 1], [], []>} : vector<144x4xf32>, vector<4x8xf32>, vector<144x8xf32> -> vector<144x8xf32>
    %40 = arith.addf %34, %39 : vector<144x8xf32>
    %c0_44 = arith.constant 0 : index
    %c0_45 = arith.constant 0 : index
    %c37 = arith.constant 37 : index
    %c0_46 = arith.constant 0 : index
    %41 = vector.load %arg2[%c0_44, %c0_45, %c37, %c0_46] : memref<1x1x184x4xf32, #tpu.memory_space<vmem>>, vector<1x1x144x4xf32>
    %42 = vector.shape_cast %41 : vector<1x1x144x4xf32> to vector<144x4xf32>
    %c7 = arith.constant 7 : index
    %c0_47 = arith.constant 0 : index
    %c0_48 = arith.constant 0 : index
    %43 = vector.load %arg3[%c7, %c0_47, %c0_48] : memref<9x4x8xf32, #tpu.memory_space<vmem>>, vector<1x4x8xf32>
    %44 = vector.shape_cast %43 : vector<1x4x8xf32> to vector<4x8xf32>
    %cst_49 = arith.constant dense<0.000000e+00> : vector<144x8xf32>
    %45 = tpu.matmul %42, %44, %cst_49 {dimension_numbers = #tpu.dot_dimension_numbers<[1], [0], [0], [1], [0, 0, 1, 1], [], []>} : vector<144x4xf32>, vector<4x8xf32>, vector<144x8xf32> -> vector<144x8xf32>
    %46 = arith.addf %40, %45 : vector<144x8xf32>
    %c0_50 = arith.constant 0 : index
    %c0_51 = arith.constant 0 : index
    %c38 = arith.constant 38 : index
    %c0_52 = arith.constant 0 : index
    %47 = vector.load %arg2[%c0_50, %c0_51, %c38, %c0_52] : memref<1x1x184x4xf32, #tpu.memory_space<vmem>>, vector<1x1x144x4xf32>
    %48 = vector.shape_cast %47 : vector<1x1x144x4xf32> to vector<144x4xf32>
    %c8 = arith.constant 8 : index
    %c0_53 = arith.constant 0 : index
    %c0_54 = arith.constant 0 : index
    %49 = vector.load %arg3[%c8, %c0_53, %c0_54] : memref<9x4x8xf32, #tpu.memory_space<vmem>>, vector<1x4x8xf32>
    %50 = vector.shape_cast %49 : vector<1x4x8xf32> to vector<4x8xf32>
    %cst_55 = arith.constant dense<0.000000e+00> : vector<144x8xf32>
    %51 = tpu.matmul %48, %50, %cst_55 {dimension_numbers = #tpu.dot_dimension_numbers<[1], [0], [0], [1], [0, 0, 1, 1], [], []>} : vector<144x4xf32>, vector<4x8xf32>, vector<144x8xf32> -> vector<144x8xf32>
    %52 = arith.addf %46, %51 : vector<144x8xf32>
    %c0_56 = arith.constant 0 : index
    %c0_57 = arith.constant 0 : index
    %53 = vector.load %arg4[%c0_56, %c0_57] : memref<1x8xf32, #tpu.memory_space<vmem>>, vector<1x8xf32>
    %54 = vector.broadcast %53 : vector<1x8xf32> to vector<144x8xf32>
    %55 = arith.addf %52, %54 : vector<144x8xf32>
    %cst_58 = arith.constant 0.000000e+00 : f32
    %56 = vector.broadcast %cst_58 : f32 to vector<144x8xf32>
    %57 = arith.cmpf oge, %55, %56 : vector<144x8xf32>
    %c0_59 = arith.constant 0 : index
    %c0_60 = arith.constant 0 : index
    %58 = vector.load %arg5[%c0_59, %c0_60] : memref<1x8xf32, #tpu.memory_space<vmem>>, vector<1x8xf32>
    %59 = vector.broadcast %58 : vector<1x8xf32> to vector<144x8xf32>
    %60 = arith.mulf %59, %55 : vector<144x8xf32>
    %61 = arith.select %57, %55, %60 : vector<144x8xi1>, vector<144x8xf32>
    %c0_61 = arith.constant 0 : index
    %c0_62 = arith.constant 0 : index
    %c0_63 = arith.constant 0 : index
    %62 = vector.load %arg6[%c0_61, %c0_62, %c0_63] : memref<1x1x8xf32, #tpu.memory_space<vmem>>, vector<1x1x8xf32>
    %63 = vector.shape_cast %62 : vector<1x1x8xf32> to vector<1x8xf32>
    %64 = vector.broadcast %63 : vector<1x8xf32> to vector<144x8xf32>
    %65 = arith.mulf %61, %64 : vector<144x8xf32>
    %c0_64 = arith.constant 0 : index
    %c0_65 = arith.constant 0 : index
    %c0_66 = arith.constant 0 : index
    %c0_67 = arith.constant 0 : index
    %66 = vector.load %arg7[%c0_64, %c0_65, %c0_66, %c0_67] : memref<1x1x144x8xf32, #tpu.memory_space<vmem>>, vector<1x1x144x8xf32>
    %67 = vector.shape_cast %66 : vector<1x1x144x8xf32> to vector<144x8xf32>
    %68 = vector.shape_cast %65 : vector<144x8xf32> to vector<1x1x144x8xf32>
    tpu.vector_store %arg7[%c0_64, %c0_65, %c0_66, %c0_67], %68 {strides = array<i32>} : memref<1x1x144x8xf32, #tpu.memory_space<vmem>>, vector<1x1x144x8xf32>,
    return
  }
  func.func @transform_0(%arg0: i32, %arg1: i32) -> (i32, i32, i32, i32) {
    %c0_i32 = arith.constant 0 : i32
    %c0_i32_0 = arith.constant 0 : i32
    %c0_i32_1 = arith.constant 0 : i32
    return %arg0, %arg1, %c0_i32, %c0_i32_0 : i32, i32, i32, i32
  }
  func.func @transform_1(%arg0: i32, %arg1: i32) -> (i32, i32, i32) {
    %c0_i32 = arith.constant 0 : i32
    %c0_i32_0 = arith.constant 0 : i32
    %c0_i32_1 = arith.constant 0 : i32
    %c0_i32_2 = arith.constant 0 : i32
    return %c0_i32, %c0_i32_0, %c0_i32_1 : i32, i32, i32
  }
  func.func @transform_2(%arg0: i32, %arg1: i32) -> (i32, i32) {
    %c0_i32 = arith.constant 0 : i32
    %c0_i32_0 = arith.constant 0 : i32
    %c0_i32_1 = arith.constant 0 : i32
    return %c0_i32, %c0_i32_0 : i32, i32
  }
  func.func @transform_3(%arg0: i32, %arg1: i32) -> (i32, i32) {
    %c0_i32 = arith.constant 0 : i32
    %c0_i32_0 = arith.constant 0 : i32
    %c0_i32_1 = arith.constant 0 : i32
    return %c0_i32, %c0_i32_0 : i32, i32
  }
  func.func @transform_4(%arg0: i32, %arg1: i32) -> (i32, i32, i32) {
    %c0_i32 = arith.constant 0 : i32
    %c0_i32_0 = arith.constant 0 : i32
    %c0_i32_1 = arith.constant 0 : i32
    return %arg0, %c0_i32, %c0_i32_0 : i32, i32, i32
  }
  func.func @transform_5(%arg0: i32, %arg1: i32) -> (i32, i32, i32, i32) {
    %c0_i32 = arith.constant 0 : i32
    %c0_i32_0 = arith.constant 0 : i32
    %c0_i32_1 = arith.constant 0 : i32
    return %arg0, %arg1, %c0_i32, %c0_i32_0 : i32, i32, i32, i32
  }
}

</mosaic_0001>

<llo_original>
// kernel: tpu_custom_call.1
$region0: #{tpu_custom_call.1}
  #allocation0 [shape = 'u32[]', space=smem, size = 0x4, offset = 0x4, fixed_abs, tag = 'smem constant byte address 0x4 - core index']
  #allocation1 [shape = 'u32[144,128]{1,0:T(1,128)}', space=vmem, size = 0x12000, scoped, tag = 'internal scratch']
  %s0 = inlined_call_operand.vmem [shape: f32[2,2,184,4], index: 0, kind: input, shape index: {}]
  %s1 = inlined_call_operand.vmem [shape: f32[9,4,8], index: 1, kind: input, shape index: {}]
  %s2 = inlined_call_operand.vmem [shape: f32[1,8], index: 2, kind: input, shape index: {}]
  %s3 = inlined_call_operand.vmem [shape: f32[1,8], index: 3, kind: input, shape index: {}]
  %s4 = inlined_call_operand.vmem [shape: f32[2,1,8], index: 4, kind: input, shape index: {}]
  %s5 = inlined_call_operand.vmem [shape: f32[2,2,144,8], index: 5, kind: output, shape index: {}]
  %s6 = sld [smem:[#allocation0]]
  $region53: #{tpu_custom_call.1} parent=0
    _
  %s8 = ssub.s32 1, %s6
  %s9 = scalar_select 0, %s8, %s6
  loop: start=0, step=1, limit=6
  $region2: #{tpu_custom_call.1} parent=0 // loop_pre_header
    _
  $region3: #{tpu_custom_call.1} parent=0 // loop_header
    %s11 = sphi 0, %s15
    %p12 = scmp.ge.s32.totalorder %s11, 6
    %s18 = sphi 0, %s30
    %s19 = sphi 0, %s26
    %s20 = sphi 0, %s18
    %s21 = sphi 0, %s19
    %s22 = sphi 0, %s20
    %s23 = sphi 0, %s21
    %s35 = sphi 0, %s37
    %s38 = sphi 0, %s35
    %s39 = sphi 0, %s38
    %s55 = sphi 0, %s39
    %s59 = sphi 0, %s59
    %s61 = sphi 0, %s59
    %s62 = sphi 0, %s61
    %s76 = sphi 0, %s62
    %s80 = sphi 0, %s80
    %s82 = sphi 0, %s80
    %s83 = sphi 0, %s82
    %s97 = sphi 0, %s83
    %s101 = sphi 0, %s101
    %s103 = sphi 0, %s101
    %s104 = sphi 0, %s103
    %s118 = sphi 0, %s104
    %s124 = sphi 0, %s126
    %s127 = sphi 0, %s124
    %s128 = sphi 0, %s127
    %s144 = sphi 0, %s128
    %s152 = sphi 0, %s154
    %s155 = sphi 0, %s152
    %s156 = sphi 0, %s155
    %s172 = sphi 0, %s156
  $region4: #{tpu_custom_call.1} parent=0 // loop_header_branch
    %14 = sbr.rel (%p12) target = $region8
  $region5: #{tpu_custom_call.1} parent=0 // loop_body
    %s16 = ssub.s32 %s11, 1
    %s17 = ssub.s32 %s11, 2
    %s24 = sadd.s32 1, %s19
    %p25 = scmp.ge.s32.totalorder %s24, 2
    %s26 = scalar_select %p25, 0, %s24
    %s27 = sadd.s32 1, %s18
    %s28 = scalar_select %p25, %s27, %s18
    %p29 = scmp.ge.s32.totalorder %s28, 2
    %s30 = scalar_select %p29, 0, %s28
    %s31 = ssub.s32 %s18, %s30
    %s32 = ssub.s32 %s19, %s26
    %s33 = sor.u32 %s31, %s32
    %p34 = scmp.eq.s32.totalorder %s33, 0
    %s36 = sadd.s32 %s35, 1
    %s37 = scalar_select %p34, %s35, %s36
    %p40 = pneg %p34
    %p41 = scmp.eq.s32.totalorder %s11, 3
    %p42 = por %p40, %p41
    %p43 = scmp.ne.s32.totalorder %s35, %s38
    %p44 = scmp.eq.s32.totalorder %s11, 0
    %p45 = por %p43, %p44
    %p46 = scmp.ne.s32.totalorder %s35, %s38
    %p47 = scmp.eq.s32.totalorder %s16, 3
    %p48 = por %p46, %p47
    %p49 = scmp.ne.s32.totalorder %s38, %s39
    %p50 = scmp.eq.s32.totalorder %s16, 0
    %p51 = por %p49, %p50
    %p52 = scmp.ne.s32.totalorder %s38, %s39
    %p53 = scmp.eq.s32.totalorder %s17, 3
    %p54 = por %p52, %p53
    %p56 = scmp.ne.s32.totalorder %s39, %s55
    %p57 = scmp.eq.s32.totalorder %s17, 0
    %p58 = por %p56, %p57
    %s60 = sadd.s32 %s59, 1
    %p63 = scmp.eq.s32.totalorder %s11, 3
    %p64 = scmp.ne.s32.totalorder %s59, %s61
    %p65 = scmp.eq.s32.totalorder %s11, 0
    %p66 = por %p64, %p65
    %p67 = scmp.ne.s32.totalorder %s59, %s61
    %p68 = scmp.eq.s32.totalorder %s16, 3
    %p69 = por %p67, %p68
    %p70 = scmp.ne.s32.totalorder %s61, %s62
    %p71 = scmp.eq.s32.totalorder %s16, 0
    %p72 = por %p70, %p71
    %p73 = scmp.ne.s32.totalorder %s61, %s62
    %p74 = scmp.eq.s32.totalorder %s17, 3
    %p75 = por %p73, %p74
    %p77 = scmp.ne.s32.totalorder %s62, %s76
    %p78 = scmp.eq.s32.totalorder %s17, 0
    %p79 = por %p77, %p78
    %s81 = sadd.s32 %s80, 1
    %p84 = scmp.eq.s32.totalorder %s11, 3
    %p85 = scmp.ne.s32.totalorder %s80, %s82
    %p86 = scmp.eq.s32.totalorder %s11, 0
    %p87 = por %p85, %p86
    %p88 = scmp.ne.s32.totalorder %s80, %s82
    %p89 = scmp.eq.s32.totalorder %s16, 3
    %p90 = por %p88, %p89
    %p91 = scmp.ne.s32.totalorder %s82, %s83
    %p92 = scmp.eq.s32.totalorder %s16, 0
    %p93 = por %p91, %p92
    %p94 = scmp.ne.s32.totalorder %s82, %s83
    %p95 = scmp.eq.s32.totalorder %s17, 3
    %p96 = por %p94, %p95
    %p98 = scmp.ne.s32.totalorder %s83, %s97
    %p99 = scmp.eq.s32.totalorder %s17, 0
    %p100 = por %p98, %p99
    %s102 = sadd.s32 %s101, 1
    %p105 = scmp.eq.s32.totalorder %s11, 3
    %p106 = scmp.ne.s32.totalorder %s101, %s103
    %p107 = scmp.eq.s32.totalorder %s11, 0
    %p108 = por %p106, %p107
    %p109 = scmp.ne.s32.totalorder %s101, %s103
    %p110 = scmp.eq.s32.totalorder %s16, 3
    %p111 = por %p109, %p110
    %p112 = scmp.ne.s32.totalorder %s103, %s104
    %p113 = scmp.eq.s32.totalorder %s16, 0
    %p114 = por %p112, %p113
    %p115 = scmp.ne.s32.totalorder %s103, %s104
    %p116 = scmp.eq.s32.totalorder %s17, 3
    %p117 = por %p115, %p116
    %p119 = scmp.ne.s32.totalorder %s104, %s118
    %p120 = scmp.eq.s32.totalorder %s17, 0
    %p121 = por %p119, %p120
    %s122 = ssub.s32 %s18, %s30
    %p123 = scmp.eq.s32.totalorder %s122, 0
    %s125 = sadd.s32 %s124, 1
    %s126 = scalar_select %p123, %s124, %s125
    %p129 = pneg %p123
    %p130 = scmp.eq.s32.totalorder %s11, 3
    %p131 = por %p129, %p130
    %p132 = scmp.ne.s32.totalorder %s124, %s127
    %p133 = scmp.eq.s32.totalorder %s11, 0
    %p134 = por %p132, %p133
    %p135 = scmp.ne.s32.totalorder %s124, %s127
    %p136 = scmp.eq.s32.totalorder %s16, 3
    %p137 = por %p135, %p136
    %p138 = scmp.ne.s32.totalorder %s127, %s128
    %p139 = scmp.eq.s32.totalorder %s16, 0
    %p140 = por %p138, %p139
    %p141 = scmp.ne.s32.totalorder %s127, %s128
    %p142 = scmp.eq.s32.totalorder %s17, 3
    %p143 = por %p141, %p142
    %p145 = scmp.ne.s32.totalorder %s128, %s144
    %p146 = scmp.eq.s32.totalorder %s17, 0
    %p147 = por %p145, %p146
    %s148 = ssub.s32 %s18, %s30
    %s149 = ssub.s32 %s19, %s26
    %s150 = sor.u32 %s148, %s149
    %p151 = scmp.eq.s32.totalorder %s150, 0
    %s153 = sadd.s32 %s152, 1
    %s154 = scalar_select %p151, %s152, %s153
    %p157 = pneg %p151
    %p158 = scmp.eq.s32.totalorder %s11, 3
    %p159 = por %p157, %p158
    %p160 = scmp.ne.s32.totalorder %s152, %s155
    %p161 = scmp.eq.s32.totalorder %s11, 0
    %p162 = por %p160, %p161
    %p163 = scmp.ne.s32.totalorder %s152, %s155
    %p164 = scmp.eq.s32.totalorder %s16, 3
    %p165 = por %p163, %p164
    %p166 = scmp.ne.s32.totalorder %s155, %s156
    %p167 = scmp.eq.s32.totalorder %s16, 0
    %p168 = por %p166, %p167
    %p169 = scmp.ne.s32.totalorder %s155, %s156
    %p170 = scmp.eq.s32.totalorder %s17, 3
    %p171 = por %p169, %p170
    %p173 = scmp.ne.s32.totalorder %s156, %s172
    %p174 = scmp.eq.s32.totalorder %s17, 0
    %p175 = por %p173, %p174
    %p176 = scmp.le.s32.totalorder 1, %s11
    %p177 = scmp.lt.s32.totalorder %s11, 5
    %p178 = pnand %p176, %p177
    %p179 = pneg %p178
    // Predicated region
    $region9: #{tpu_custom_call.1} parent=5 // pred_check
      _
    $region10: #{tpu_custom_call.1} parent=5 // pred_check_branch
      %181 = sbr.rel (%p178) target = $region12
    $region11: #{tpu_custom_call.1} parent=5 // pred_region
      %s182 = ssub.s32 %s11, 1
      // Predicated region
      $region13: #{tpu_custom_call.1} parent=11 // pred_check
        %p183 = pneg %p72
      $region14: #{tpu_custom_call.1} parent=11 // pred_check_branch
        %185 = sbr.rel (%p183) target = $region16
      $region15: #{tpu_custom_call.1} parent=11 // pred_region
        _
      $region16: #{tpu_custom_call.1} parent=11 // pred_fallthru
        _
      // Predicated region
      $region17: #{tpu_custom_call.1} parent=11 // pred_check
        %p186 = pneg %p93
      $region18: #{tpu_custom_call.1} parent=11 // pred_check_branch
        %188 = sbr.rel (%p186) target = $region20
      $region19: #{tpu_custom_call.1} parent=11 // pred_region
        _
      $region20: #{tpu_custom_call.1} parent=11 // pred_fallthru
        _
      // Predicated region
      $region21: #{tpu_custom_call.1} parent=11 // pred_check
        %p189 = pneg %p114
      $region22: #{tpu_custom_call.1} parent=11 // pred_check_branch
        %191 = sbr.rel (%p189) target = $region24
      $region23: #{tpu_custom_call.1} parent=11 // pred_region
        _
      $region24: #{tpu_custom_call.1} parent=11 // pred_fallthru
        _
    $region12: #{tpu_custom_call.1} parent=5 // pred_fallthru
      _
    %p192 = scmp.lt.s32.totalorder %s11, 4
    // Predicated region
    $region25: #{tpu_custom_call.1} parent=5 // pred_check
      %p193 = pneg %p192
    $region26: #{tpu_custom_call.1} parent=5 // pred_check_branch
      %195 = sbr.rel (%p193) target = $region28
    $region27: #{tpu_custom_call.1} parent=5 // pred_region
      // Predicated region
      $region29: #{tpu_custom_call.1} parent=27 // pred_check
        %p196 = pneg %p45
      $region30: #{tpu_custom_call.1} parent=27 // pred_check_branch
        %198 = sbr.rel (%p196) target = $region32
      $region31: #{tpu_custom_call.1} parent=27 // pred_region
        %p199 = scmp.lt.s32.totalorder %s18, 1
        %s200 = scalar_select %p199, %s18, 1
        %p201 = scmp.lt.s32.totalorder %s19, 1
        %s202 = scalar_select %p201, %s19, 1
        %s203 = smul.addr %s202, 23
        %s204 = smul.addr %s200, 46
        %s205 = sadd.s32 %s203, %s204
        %s206 = smul.addr %s205, 8
        %s207 = scalar_lea.vmem %s0, %s206
      $region32: #{tpu_custom_call.1} parent=27 // pred_fallthru
        _
      // Predicated region
      $region33: #{tpu_custom_call.1} parent=27 // pred_check
        %p208 = pneg %p134
      $region34: #{tpu_custom_call.1} parent=27 // pred_check_branch
        %210 = sbr.rel (%p208) target = $region36
      $region35: #{tpu_custom_call.1} parent=27 // pred_region
        %p211 = scmp.lt.s32.totalorder %s18, 1
        %s212 = scalar_select %p211, %s18, 1
        %s213 = scalar_lea.vmem %s4, %s212
      $region36: #{tpu_custom_call.1} parent=27 // pred_fallthru
        _
    $region28: #{tpu_custom_call.1} parent=5 // pred_fallthru
      _
    %p214 = scmp.le.s32.totalorder 1, %s11
    %p215 = scmp.lt.s32.totalorder %s11, 5
    %p216 = pnand %p214, %p215
    %p217 = pneg %p216
    // Predicated region
    $region37: #{tpu_custom_call.1} parent=5 // pred_check
      _
    $region38: #{tpu_custom_call.1} parent=5 // pred_check_branch
      %219 = sbr.rel (%p216) target = $region40
    $region39: #{tpu_custom_call.1} parent=5 // pred_region
      %s220 = ssub.s32 %s11, 1
      %p221 = scmp.lt.s32.totalorder %s20, 1
      %s222 = scalar_select %p221, %s20, 1
      %p223 = scmp.lt.s32.totalorder %s21, 1
      %s224 = scalar_select %p223, %s21, 1
      %s225 = smul.addr %s224, 23
      %s226 = smul.addr %s222, 46
      %s227 = sadd.s32 %s225, %s226
      %s228 = smul.addr %s227, 8
      %s229 = scalar_lea.vmem %s0, %s228
      %p230 = pneg %p51
      %p231 = pneg %p48
      %p232 = pneg %p72
      %p233 = pneg %p69
      %p234 = pneg %p93
      %p235 = pneg %p90
      %p236 = pneg %p114
      %p237 = pneg %p111
      %p238 = scmp.lt.s32.totalorder %s20, 1
      %s239 = scalar_select %p238, %s20, 1
      %s240 = scalar_lea.vmem %s4, %s239
      %p241 = pneg %p140
      %p242 = pneg %p137
      %p243 = pneg %p168
      %p244 = pneg %p165
      %p245 = scmp.lt.s32.totalorder %s20, 1
      %s246 = scalar_select %p245, %s20, 1
      %p247 = scmp.lt.s32.totalorder %s21, 1
      %s248 = scalar_select %p247, %s21, 1
      %s249 = smul.addr %s248, 18
      %s250 = smul.addr %s246, 36
      %s251 = sadd.s32 %s249, %s250
      %s252 = smul.addr %s251, 8
      %s253 = scalar_lea.vmem %s5, %s252
      %p254 = scmp.lt.s32.totalorder %s20, 1
      %s255 = scalar_select %p254, %s20, 1
      %p256 = scmp.lt.s32.totalorder %s21, 1
      %s257 = scalar_select %p256, %s21, 1
      %s258 = smul.addr %s257, 23
      %s259 = smul.addr %s255, 46
      %s260 = sadd.s32 %s258, %s259
      %s261 = smul.addr %s260, 8
      %s262 = scalar_lea.vmem %s0, %s261
      %p263 = scmp.lt.s32.totalorder %s20, 1
      %s264 = scalar_select %p263, %s20, 1
      %s265 = scalar_lea.vmem %s4, %s264
      %p266 = scmp.lt.s32.totalorder %s20, 1
      %s267 = scalar_select %p266, %s20, 1
      %p268 = scmp.lt.s32.totalorder %s21, 1
      %s269 = scalar_select %p268, %s21, 1
      %s270 = smul.addr %s269, 18
      %s271 = smul.addr %s267, 36
      %s272 = sadd.s32 %s270, %s271
      %s273 = smul.addr %s272, 8
      %s274 = scalar_lea.vmem %s5, %s273
      %v275 = vld [vmem:[%s262] sm:$0xff]
      %v276 = vld [vmem:[%s262 + $0x8] sm:$0xff]
      %v277 = vld [vmem:[%s262 + $0x10] sm:$0xff]
      %v278 = vld [vmem:[%s262 + $0x18] sm:$0xff]
      %v279 = vld [vmem:[%s262 + $0x20] sm:$0xff]
      %v280 = vld [vmem:[%s262 + $0x28] sm:$0xff]
      %v281 = vld [vmem:[%s262 + $0x30] sm:$0xff]
      %v282 = vld [vmem:[%s262 + $0x38] sm:$0xff]
      %v283 = vld [vmem:[%s262 + $0x40] sm:$0xff]
      %v284 = vld [vmem:[%s262 + $0x48] sm:$0xff]
      %v285 = vld [vmem:[%s262 + $0x50] sm:$0xff]
      %v286 = vld [vmem:[%s262 + $0x58] sm:$0xff]
      %v287 = vld [vmem:[%s262 + $0x60] sm:$0xff]
      %v288 = vld [vmem:[%s262 + $0x68] sm:$0xff]
      %v289 = vld [vmem:[%s262 + $0x70] sm:$0xff]
      %v290 = vld [vmem:[%s262 + $0x78] sm:$0xff]
      %v291 = vld [vmem:[%s262 + $0x80] sm:$0xff]
      %v292 = vld [vmem:[%s262 + $0x88] sm:$0xff]
      %v293 = vld [vmem:[%s1] sm:$0xf]
      %v294 = vld [vmem:[%s262 + $0x1] sm:$0xff]
      %v295 = vld [vmem:[%s262 + $0x9] sm:$0xff]
      %v296 = vld [vmem:[%s262 + $0x11] sm:$0xff]
      %v297 = vld [vmem:[%s262 + $0x19] sm:$0xff]
      %v298 = vld [vmem:[%s262 + $0x21] sm:$0xff]
      %v299 = vld [vmem:[%s262 + $0x29] sm:$0xff]
      %v300 = vld [vmem:[%s262 + $0x31] sm:$0xff]
      %v301 = vld [vmem:[%s262 + $0x39] sm:$0xff]
      %v302 = vld [vmem:[%s262 + $0x41] sm:$0xff]
      %v303 = vld [vmem:[%s262 + $0x49] sm:$0xff]
      %v304 = vld [vmem:[%s262 + $0x51] sm:$0xff]
      %v305 = vld [vmem:[%s262 + $0x59] sm:$0xff]
      %v306 = vld [vmem:[%s262 + $0x61] sm:$0xff]
      %v307 = vld [vmem:[%s262 + $0x69] sm:$0xff]
      %v308 = vld [vmem:[%s262 + $0x71] sm:$0xff]
      %v309 = vld [vmem:[%s262 + $0x79] sm:$0xff]
      %v310 = vld [vmem:[%s262 + $0x81] sm:$0xff]
      %v311 = vld [vmem:[%s262 + $0x89] sm:$0xff]
      %s312 = scalar_lea.vmem %s1, 4
      %v313 = vld [vmem:[%s312] sm:$0xf]
      %vm314 = vcmask 31744
      %v316 = vsel %vm314, %v294, 0
      %v319 = vsel %vm314, %v295, 0
      %v322 = vsel %vm314, %v296, 0
      %v325 = vsel %vm314, %v297, 0
      %v328 = vsel %vm314, %v298, 0
      %v331 = vsel %vm314, %v299, 0
      %v334 = vsel %vm314, %v300, 0
      %v337 = vsel %vm314, %v301, 0
      %v340 = vsel %vm314, %v302, 0
      %v343 = vsel %vm314, %v303, 0
      %v346 = vsel %vm314, %v304, 0
      %v349 = vsel %vm314, %v305, 0
      %v352 = vsel %vm314, %v306, 0
      %v355 = vsel %vm314, %v307, 0
      %v358 = vsel %vm314, %v308, 0
      %v361 = vsel %vm314, %v309, 0
      %v364 = vsel %vm314, %v310, 0
      %v367 = vsel %vm314, %v311, 0
      %vm369 = vcmask 1043456
      %v371 = vsel %vm369, %v313, 0
      %373 = vmatprep.subr.mxu0 0.0
      %374 = vmatpush1.msra.mxu0 %v371
      %375 = vmatprep.subr.mxu0 0.0
      %376 = vmatpush1.msra.mxu0 0.0
      %377 = vmatprep.subr.mxu0 0.0
      %378 = vmatpush1.msra.mxu0 0.0
      %379 = vmatprep.subr.mxu0 0.0
      %380 = vmatpush1.msra.mxu0 0.0
      %381 = vmatprep.subr.mxu0 0.0
      %382 = vmatpush1.msra.mxu0 0.0
      %383 = vmatprep.subr.mxu0 0.0
      %384 = vmatpush1.msra.mxu0 0.0
      %385 = vmatprep.subr.mxu0 0.0
      %386 = vmatpush1.msra.mxu0 0.0
      %387 = vmatprep.subr.mxu0 0.0
      %388 = vmatpush1.msra.mxu0 0.0
      %389 = vmatprep.subr.mxu0 0.0
      %390 = vmatpush1.msra.mxu0 0.0
      %391 = vmatprep.subr.mxu0 0.0
      %392 = vmatpush1.msra.mxu0 0.0
      %393 = vmatprep.subr.mxu0 0.0
      %394 = vmatpush1.msra.mxu0 0.0
      %395 = vmatprep.subr.mxu0 0.0
      %396 = vmatpush1.msra.mxu0 0.0
      %397 = vmatprep.subr.mxu0 0.0
      %398 = vmatpush1.msra.mxu0 0.0
      %399 = vmatprep.subr.mxu0 0.0
      %400 = vmatpush1.msra.mxu0 0.0
      %401 = vmatprep.subr.mxu0 0.0
      %402 = vmatpush1.msra.mxu0 0.0
      %403 = vmatprep.subr.mxu0 0.0
      %404 = vmatpush1.msra.mxu0 0.0
      %405 = vmatprep.subr.mxu0 0.0
      %406 = vmatpush1.msra.mxu0 0.0
      %407 = vmatprep.subr.mxu0 0.0
      %408 = vmatpush1.msra.mxu0 0.0
      %409 = vmatprep.subr.mxu0 0.0
      %410 = vmatpush1.msra.mxu0 0.0
      %411 = vmatprep.subr.mxu0 0.0
      %412 = vmatpush1.msra.mxu0 0.0
      %413 = vmatprep.subr.mxu0 0.0
      %414 = vmatpush1.msra.mxu0 0.0
      %415 = vmatprep.subr.mxu0 0.0
      %416 = vmatpush1.msra.mxu0 0.0
      %417 = vmatprep.subr.mxu0 0.0
      %418 = vmatpush1.msra.mxu0 0.0
      %419 = vmatprep.subr.mxu0 0.0
      %420 = vmatpush1.msra.mxu0 0.0
      %421 = vmatprep.subr.mxu0 0.0
      %422 = vmatpush1.msra.mxu0 0.0
      %423 = vmatprep.subr.mxu0 0.0
      %424 = vmatpush1.msra.mxu0 0.0
      %425 = vmatprep.subr.mxu0 0.0
      %426 = vmatpush1.msra.mxu0 0.0
      %427 = vmatprep.subr.mxu0 0.0
      %428 = vmatpush1.msra.mxu0 0.0
      %429 = vmatprep.subr.mxu0 0.0
      %430 = vmatpush1.msra.mxu0 0.0
      %431 = vmatprep.subr.mxu0 0.0
      %432 = vmatpush1.msra.mxu0 0.0
      %433 = vmatprep.subr.mxu0 0.0
      %434 = vmatpush1.msra.mxu0 0.0
      %435 = vmatprep.subr.mxu0 0.0
      %436 = vmatpush1.msra.mxu0 0.0
      %437 = vmatprep.mubr.f32.mxu0 0.0
      %438 = vmatmul.mubr.f32.gmra.mrb[0].mxu0 %v316
      %v439 = vpop.f32.mrb[0].mxu0
      %v440 = vadd.f32 0.0, %v439
      %v441 = vpop.f32.mrb[0].mxu0
      %442 = vmatprep.mubr.f32.mxu0 0.0
      %443 = vmatmul.mubr.f32.gmra.mrb[0].mxu0 %v319
      %v444 = vpop.f32.mrb[0].mxu0
      %v445 = vadd.f32 0.0, %v444
      %v446 = vpop.f32.mrb[0].mxu0
      %447 = vmatprep.mubr.f32.mxu0 0.0
      %448 = vmatmul.mubr.f32.gmra.mrb[0].mxu0 %v322
      %v449 = vpop.f32.mrb[0].mxu0
      %v450 = vadd.f32 0.0, %v449
      %v451 = vpop.f32.mrb[0].mxu0
      %452 = vmatprep.mubr.f32.mxu0 0.0
      %453 = vmatmul.mubr.f32.gmra.mrb[0].mxu0 %v325
      %v454 = vpop.f32.mrb[0].mxu0
      %v455 = vadd.f32 0.0, %v454
      %v456 = vpop.f32.mrb[0].mxu0
      %457 = vmatprep.mubr.f32.mxu0 0.0
      %458 = vmatmul.mubr.f32.gmra.mrb[0].mxu0 %v328
      %v459 = vpop.f32.mrb[0].mxu0
      %v460 = vadd.f32 0.0, %v459
      %v461 = vpop.f32.mrb[0].mxu0
      %462 = vmatprep.mubr.f32.mxu0 0.0
      %463 = vmatmul.mubr.f32.gmra.mrb[0].mxu0 %v331
      %v464 = vpop.f32.mrb[0].mxu0
      %v465 = vadd.f32 0.0, %v464
      %v466 = vpop.f32.mrb[0].mxu0
      %467 = vmatprep.mubr.f32.mxu0 0.0
      %468 = vmatmul.mubr.f32.gmra.mrb[0].mxu0 %v334
      %v469 = vpop.f32.mrb[0].mxu0
      %v470 = vadd.f32 0.0, %v469
      %v471 = vpop.f32.mrb[0].mxu0
      %472 = vmatprep.mubr.f32.mxu0 0.0
      %473 = vmatmul.mubr.f32.gmra.mrb[0].mxu0 %v337
      %v474 = vpop.f32.mrb[0].mxu0
      %v475 = vadd.f32 0.0, %v474
      %v476 = vpop.f32.mrb[0].mxu0
      %477 = vmatprep.mubr.f32.mxu0 0.0
      %478 = vmatmul.mubr.f32.gmra.mrb[0].mxu0 %v340
      %v479 = vpop.f32.mrb[0].mxu0
      %v480 = vadd.f32 0.0, %v479
      %v481 = vpop.f32.mrb[0].mxu0
      %482 = vmatprep.mubr.f32.mxu0 0.0
      %483 = vmatmul.mubr.f32.gmra.mrb[0].mxu0 %v343
      %v484 = vpop.f32.mrb[0].mxu0
      %v485 = vadd.f32 0.0, %v484
      %v486 = vpop.f32.mrb[0].mxu0
      %487 = vmatprep.mubr.f32.mxu0 0.0
      %488 = vmatmul.mubr.f32.gmra.mrb[0].mxu0 %v346
      %v489 = vpop.f32.mrb[0].mxu0
      %v490 = vadd.f32 0.0, %v489
      %v491 = vpop.f32.mrb[0].mxu0
      %492 = vmatprep.mubr.f32.mxu0 0.0
      %493 = vmatmul.mubr.f32.gmra.mrb[0].mxu0 %v349
      %v494 = vpop.f32.mrb[0].mxu0
      %v495 = vadd.f32 0.0, %v494
      %v496 = vpop.f32.mrb[0].mxu0
      %497 = vmatprep.mubr.f32.mxu0 0.0
      %498 = vmatmul.mubr.f32.gmra.mrb[0].mxu0 %v352
      %v499 = vpop.f32.mrb[0].mxu0
      %v500 = vadd.f32 0.0, %v499
      %v501 = vpop.f32.mrb[0].mxu0
      %502 = vmatprep.mubr.f32.mxu0 0.0
      %503 = vmatmul.mubr.f32.gmra.mrb[0].mxu0 %v355
      %v504 = vpop.f32.mrb[0].mxu0
      %v505 = vadd.f32 0.0, %v504
      %v506 = vpop.f32.mrb[0].mxu0
      %507 = vmatprep.mubr.f32.mxu0 0.0
      %508 = vmatmul.mubr.f32.gmra.mrb[0].mxu0 %v358
      %v509 = vpop.f32.mrb[0].mxu0
      %v510 = vadd.f32 0.0, %v509
      %v511 = vpop.f32.mrb[0].mxu0
      %512 = vmatprep.mubr.f32.mxu0 0.0
      %513 = vmatmul.mubr.f32.gmra.mrb[0].mxu0 %v361
      %v514 = vpop.f32.mrb[0].mxu0
      %v515 = vadd.f32 0.0, %v514
      %v516 = vpop.f32.mrb[0].mxu0
      %517 = vmatprep.mubr.f32.mxu0 0.0
      %518 = vmatmul.mubr.f32.gmra.mrb[0].mxu0 %v364
      %v519 = vpop.f32.mrb[0].mxu0
      %v520 = vadd.f32 0.0, %v519
      %v521 = vpop.f32.mrb[0].mxu0
      %522 = vmatprep.mubr.f32.mxu0 0.0
      %523 = vmatmul.mubr.f32.gmra.mrb[0].mxu0 %v367
      %v524 = vpop.f32.mrb[0].mxu0
      %v525 = vadd.f32 0.0, %v524
      %v526 = vpop.f32.mrb[0].mxu0
      %527 = vdwg.mxu0
      %v529 = vsel %vm314, %v275, 0
      %v532 = vsel %vm314, %v276, 0
      %v535 = vsel %vm314, %v277, 0
      %v538 = vsel %vm314, %v278, 0
      %v541 = vsel %vm314, %v279, 0
      %v544 = vsel %vm314, %v280, 0
      %v547 = vsel %vm314, %v281, 0
      %v550 = vsel %vm314, %v282, 0
      %v553 = vsel %vm314, %v283, 0
      %v556 = vsel %vm314, %v284, 0
      %v559 = vsel %vm314, %v285, 0
      %v562 = vsel %vm314, %v286, 0
      %v565 = vsel %vm314, %v287, 0
      %v568 = vsel %vm314, %v288, 0
      %v571 = vsel %vm314, %v289, 0
      %v574 = vsel %vm314, %v290, 0
      %v577 = vsel %vm314, %v291, 0
      %v580 = vsel %vm314, %v292, 0
      %v583 = vsel %vm369, %v293, 0
      %585 = vmatprep.subr.mxu0 0.0
      %586 = vmatpush1.msra.mxu0 %v583
      %587 = vmatprep.subr.mxu0 0.0
      %588 = vmatpush1.msra.mxu0 0.0
      %589 = vmatprep.subr.mxu0 0.0
      %590 = vmatpush1.msra.mxu0 0.0
      %591 = vmatprep.subr.mxu0 0.0
      %592 = vmatpush1.msra.mxu0 0.0
      %593 = vmatprep.subr.mxu0 0.0
      %594 = vmatpush1.msra.mxu0 0.0
      %595 = vmatprep.subr.mxu0 0.0
      %596 = vmatpush1.msra.mxu0 0.0
      %597 = vmatprep.subr.mxu0 0.0
      %598 = vmatpush1.msra.mxu0 0.0
      %599 = vmatprep.subr.mxu0 0.0
      %600 = vmatpush1.msra.mxu0 0.0
      %601 = vmatprep.subr.mxu0 0.0
      %602 = vmatpush1.msra.mxu0 0.0
      %603 = vmatprep.subr.mxu0 0.0
      %604 = vmatpush1.msra.mxu0 0.0
      %605 = vmatprep.subr.mxu0 0.0
      %606 = vmatpush1.msra.mxu0 0.0
      %607 = vmatprep.subr.mxu0 0.0
      %608 = vmatpush1.msra.mxu0 0.0
      %609 = vmatprep.subr.mxu0 0.0
      %610 = vmatpush1.msra.mxu0 0.0
      %611 = vmatprep.subr.mxu0 0.0
      %612 = vmatpush1.msra.mxu0 0.0
      %613 = vmatprep.subr.mxu0 0.0
      %614 = vmatpush1.msra.mxu0 0.0
      %615 = vmatprep.subr.mxu0 0.0
      %616 = vmatpush1.msra.mxu0 0.0
      %617 = vmatprep.subr.mxu0 0.0
      %618 = vmatpush1.msra.mxu0 0.0
      %619 = vmatprep.subr.mxu0 0.0
      %620 = vmatpush1.msra.mxu0 0.0
      %621 = vmatprep.subr.mxu0 0.0
      %622 = vmatpush1.msra.mxu0 0.0
      %623 = vmatprep.subr.mxu0 0.0
      %624 = vmatpush1.msra.mxu0 0.0
      %625 = vmatprep.subr.mxu0 0.0
      %626 = vmatpush1.msra.mxu0 0.0
      %627 = vmatprep.subr.mxu0 0.0
      %628 = vmatpush1.msra.mxu0 0.0
      %629 = vmatprep.subr.mxu0 0.0
      %630 = vmatpush1.msra.mxu0 0.0
      %631 = vmatprep.subr.mxu0 0.0
      %632 = vmatpush1.msra.mxu0 0.0
      %633 = vmatprep.subr.mxu0 0.0
      %634 = vmatpush1.msra.mxu0 0.0
      %635 = vmatprep.subr.mxu0 0.0
      %636 = vmatpush1.msra.mxu0 0.0
      %637 = vmatprep.subr.mxu0 0.0
      %638 = vmatpush1.msra.mxu0 0.0
      %639 = vmatprep.subr.mxu0 0.0
      %640 = vmatpush1.msra.mxu0 0.0
      %641 = vmatprep.subr.mxu0 0.0
      %642 = vmatpush1.msra.mxu0 0.0
      %643 = vmatprep.subr.mxu0 0.0
      %644 = vmatpush1.msra.mxu0 0.0
      %645 = vmatprep.subr.mxu0 0.0
      %646 = vmatpush1.msra.mxu0 0.0
      %647 = vmatprep.subr.mxu0 0.0
      %648 = vmatpush1.msra.mxu0 0.0
      %649 = vmatprep.mubr.f32.mxu0 0.0
      %650 = vmatmul.mubr.f32.gmra.mrb[0].mxu0 %v529
      %v651 = vpop.f32.mrb[0].mxu0
      %v652 = vadd.f32 %v440, %v651
      %v653 = vpop.f32.mrb[0].mxu0
      %654 = vmatprep.mubr.f32.mxu0 0.0
      %655 = vmatmul.mubr.f32.gmra.mrb[0].mxu0 %v532
      %v656 = vpop.f32.mrb[0].mxu0
      %v657 = vadd.f32 %v445, %v656
      %v658 = vpop.f32.mrb[0].mxu0
      %659 = vmatprep.mubr.f32.mxu0 0.0
      %660 = vmatmul.mubr.f32.gmra.mrb[0].mxu0 %v535
      %v661 = vpop.f32.mrb[0].mxu0
      %v662 = vadd.f32 %v450, %v661
      %v663 = vpop.f32.mrb[0].mxu0
      %664 = vmatprep.mubr.f32.mxu0 0.0
      %665 = vmatmul.mubr.f32.gmra.mrb[0].mxu0 %v538
      %v666 = vpop.f32.mrb[0].mxu0
      %v667 = vadd.f32 %v455, %v666
      %v668 = vpop.f32.mrb[0].mxu0
      %669 = vmatprep.mubr.f32.mxu0 0.0
      %670 = vmatmul.mubr.f32.gmra.mrb[0].mxu0 %v541
      %v671 = vpop.f32.mrb[0].mxu0
      %v672 = vadd.f32 %v460, %v671
      %v673 = vpop.f32.mrb[0].mxu0
      %674 = vmatprep.mubr.f32.mxu0 0.0
      %675 = vmatmul.mubr.f32.gmra.mrb[0].mxu0 %v544
      %v676 = vpop.f32.mrb[0].mxu0
      %v677 = vadd.f32 %v465, %v676
      %v678 = vpop.f32.mrb[0].mxu0
      %679 = vmatprep.mubr.f32.mxu0 0.0
      %680 = vmatmul.mubr.f32.gmra.mrb[0].mxu0 %v547
      %v681 = vpop.f32.mrb[0].mxu0
      %v682 = vadd.f32 %v470, %v681
      %v683 = vpop.f32.mrb[0].mxu0
      %684 = vmatprep.mubr.f32.mxu0 0.0
      %685 = vmatmul.mubr.f32.gmra.mrb[0].mxu0 %v550
      %v686 = vpop.f32.mrb[0].mxu0
      %v687 = vadd.f32 %v475, %v686
      %v688 = vpop.f32.mrb[0].mxu0
      %689 = vmatprep.mubr.f32.mxu0 0.0
      %690 = vmatmul.mubr.f32.gmra.mrb[0].mxu0 %v553
      %v691 = vpop.f32.mrb[0].mxu0
      %v692 = vadd.f32 %v480, %v691
      %v693 = vpop.f32.mrb[0].mxu0
      %694 = vmatprep.mubr.f32.mxu0 0.0
      %695 = vmatmul.mubr.f32.gmra.mrb[0].mxu0 %v556
      %v696 = vpop.f32.mrb[0].mxu0
      %v697 = vadd.f32 %v485, %v696
      %v698 = vpop.f32.mrb[0].mxu0
      %699 = vmatprep.mubr.f32.mxu0 0.0
      %700 = vmatmul.mubr.f32.gmra.mrb[0].mxu0 %v559
      %v701 = vpop.f32.mrb[0].mxu0
      %v702 = vadd.f32 %v490, %v701
      %v703 = vpop.f32.mrb[0].mxu0
      %704 = vmatprep.mubr.f32.mxu0 0.0
      %705 = vmatmul.mubr.f32.gmra.mrb[0].mxu0 %v562
      %v706 = vpop.f32.mrb[0].mxu0
      %v707 = vadd.f32 %v495, %v706
      %v708 = vpop.f32.mrb[0].mxu0
      %709 = vmatprep.mubr.f32.mxu0 0.0
      %710 = vmatmul.mubr.f32.gmra.mrb[0].mxu0 %v565
      %v711 = vpop.f32.mrb[0].mxu0
      %v712 = vadd.f32 %v500, %v711
      %v713 = vpop.f32.mrb[0].mxu0
      %714 = vmatprep.mubr.f32.mxu0 0.0
      %715 = vmatmul.mubr.f32.gmra.mrb[0].mxu0 %v568
      %v716 = vpop.f32.mrb[0].mxu0
      %v717 = vadd.f32 %v505, %v716
      %v718 = vpop.f32.mrb[0].mxu0
      %719 = vmatprep.mubr.f32.mxu0 0.0
      %720 = vmatmul.mubr.f32.gmra.mrb[0].mxu0 %v571
      %v721 = vpop.f32.mrb[0].mxu0
      %v722 = vadd.f32 %v510, %v721
      %v723 = vpop.f32.mrb[0].mxu0
      %724 = vmatprep.mubr.f32.mxu0 0.0
      %725 = vmatmul.mubr.f32.gmra.mrb[0].mxu0 %v574
      %v726 = vpop.f32.mrb[0].mxu0
      %v727 = vadd.f32 %v515, %v726
      %v728 = vpop.f32.mrb[0].mxu0
      %729 = vmatprep.mubr.f32.mxu0 0.0
      %730 = vmatmul.mubr.f32.gmra.mrb[0].mxu0 %v577
      %v731 = vpop.f32.mrb[0].mxu0
      %v732 = vadd.f32 %v520, %v731
      %v733 = vpop.f32.mrb[0].mxu0
      %734 = vmatprep.mubr.f32.mxu0 0.0
      %735 = vmatmul.mubr.f32.gmra.mrb[0].mxu0 %v580
      %v736 = vpop.f32.mrb[0].mxu0
      %v737 = vadd.f32 %v525, %v736
      %v738 = vpop.f32.mrb[0].mxu0
      %739 = vdwg.mxu0
      %v740 = vld [vmem:[%s262 + $0x2] sm:$0xff]
      %v741 = vld [vmem:[%s262 + $0xa] sm:$0xff]
      %v742 = vld [vmem:[%s262 + $0x12] sm:$0xff]
      %v743 = vld [vmem:[%s262 + $0x1a] sm:$0xff]
      %v744 = vld [vmem:[%s262 + $0x22] sm:$0xff]
      %v745 = vld [vmem:[%s262 + $0x2a] sm:$0xff]
      %v746 = vld [vmem:[%s262 + $0x32] sm:$0xff]
      %v747 = vld [vmem:[%s262 + $0x3a] sm:$0xff]
      %v748 = vld [vmem:[%s262 + $0x42] sm:$0xff]
      %v749 = vld [vmem:[%s262 + $0x4a] sm:$0xff]
      %v750 = vld [vmem:[%s262 + $0x52] sm:$0xff]
      %v751 = vld [vmem:[%s262 + $0x5a] sm:$0xff]
      %v752 = vld [vmem:[%s262 + $0x62] sm:$0xff]
      %v753 = vld [vmem:[%s262 + $0x6a] sm:$0xff]
      %v754 = vld [vmem:[%s262 + $0x72] sm:$0xff]
      %v755 = vld [vmem:[%s262 + $0x7a] sm:$0xff]
      %v756 = vld [vmem:[%s262 + $0x82] sm:$0xff]
      %v757 = vld [vmem:[%s262 + $0x8a] sm:$0xff]
      %s758 = scalar_lea.vmem %s1, 8
      %v759 = vld [vmem:[%s758] sm:$0xf]
      %v761 = vsel %vm314, %v740, 0
      %v764 = vsel %vm314, %v741, 0
      %v767 = vsel %vm314, %v742, 0
      %v770 = vsel %vm314, %v743, 0
      %v773 = vsel %vm314, %v744, 0
      %v776 = vsel %vm314, %v745, 0
      %v779 = vsel %vm314, %v746, 0
      %v782 = vsel %vm314, %v747, 0
      %v785 = vsel %vm314, %v748, 0
      %v788 = vsel %vm314, %v749, 0
      %v791 = vsel %vm314, %v750, 0
      %v794 = vsel %vm314, %v751, 0
      %v797 = vsel %vm314, %v752, 0
      %v800 = vsel %vm314, %v753, 0
      %v803 = vsel %vm314, %v754, 0
      %v806 = vsel %vm314, %v755, 0
      %v809 = vsel %vm314, %v756, 0
      %v812 = vsel %vm314, %v757, 0
      %v815 = vsel %vm369, %v759, 0
      %817 = vmatprep.subr.mxu0 0.0
      %818 = vmatpush1.msra.mxu0 %v815
      %819 = vmatprep.subr.mxu0 0.0
      %820 = vmatpush1.msra.mxu0 0.0
      %821 = vmatprep.subr.mxu0 0.0
      %822 = vmatpush1.msra.mxu0 0.0
      %823 = vmatprep.subr.mxu0 0.0
      %824 = vmatpush1.msra.mxu0 0.0
      %825 = vmatprep.subr.mxu0 0.0
      %826 = vmatpush1.msra.mxu0 0.0
      %827 = vmatprep.subr.mxu0 0.0
      %828 = vmatpush1.msra.mxu0 0.0
      %829 = vmatprep.subr.mxu0 0.0
      %830 = vmatpush1.msra.mxu0 0.0
      %831 = vmatprep.subr.mxu0 0.0
      %832 = vmatpush1.msra.mxu0 0.0
      %833 = vmatprep.subr.mxu0 0.0
      %834 = vmatpush1.msra.mxu0 0.0
      %835 = vmatprep.subr.mxu0 0.0
      %836 = vmatpush1.msra.mxu0 0.0
      %837 = vmatprep.subr.mxu0 0.0
      %838 = vmatpush1.msra.mxu0 0.0
      %839 = vmatprep.subr.mxu0 0.0
      %840 = vmatpush1.msra.mxu0 0.0
      %841 = vmatprep.subr.mxu0 0.0
      %842 = vmatpush1.msra.mxu0 0.0
      %843 = vmatprep.subr.mxu0 0.0
      %844 = vmatpush1.msra.mxu0 0.0
      %845 = vmatprep.subr.mxu0 0.0
      %846 = vmatpush1.msra.mxu0 0.0
      %847 = vmatprep.subr.mxu0 0.0
      %848 = vmatpush1.msra.mxu0 0.0
      %849 = vmatprep.subr.mxu0 0.0
      %850 = vmatpush1.msra.mxu0 0.0
      %851 = vmatprep.subr.mxu0 0.0
      %852 = vmatpush1.msra.mxu0 0.0
      %853 = vmatprep.subr.mxu0 0.0
      %854 = vmatpush1.msra.mxu0 0.0
      %855 = vmatprep.subr.mxu0 0.0
      %856 = vmatpush1.msra.mxu0 0.0
      %857 = vmatprep.subr.mxu0 0.0
      %858 = vmatpush1.msra.mxu0 0.0
      %859 = vmatprep.subr.mxu0 0.0
      %860 = vmatpush1.msra.mxu0 0.0
      %861 = vmatprep.subr.mxu0 0.0
      %862 = vmatpush1.msra.mxu0 0.0
      %863 = vmatprep.subr.mxu0 0.0
      %864 = vmatpush1.msra.mxu0 0.0
      %865 = vmatprep.subr.mxu0 0.0
      %866 = vmatpush1.msra.mxu0 0.0
      %867 = vmatprep.subr.mxu0 0.0
      %868 = vmatpush1.msra.mxu0 0.0
      %869 = vmatprep.subr.mxu0 0.0
      %870 = vmatpush1.msra.mxu0 0.0
      %871 = vmatprep.subr.mxu0 0.0
      %872 = vmatpush1.msra.mxu0 0.0
      %873 = vmatprep.subr.mxu0 0.0
      %874 = vmatpush1.msra.mxu0 0.0
      %875 = vmatprep.subr.mxu0 0.0
      %876 = vmatpush1.msra.mxu0 0.0
      %877 = vmatprep.subr.mxu0 0.0
      %878 = vmatpush1.msra.mxu0 0.0
      %879 = vmatprep.subr.mxu0 0.0
      %880 = vmatpush1.msra.mxu0 0.0
      %881 = vmatprep.mubr.f32.mxu0 0.0
      %882 = vmatmul.mubr.f32.gmra.mrb[0].mxu0 %v761
      %v883 = vpop.f32.mrb[0].mxu0
      %v884 = vadd.f32 0.0, %v883
      %v885 = vpop.f32.mrb[0].mxu0
      %886 = vmatprep.mubr.f32.mxu0 0.0
      %887 = vmatmul.mubr.f32.gmra.mrb[0].mxu0 %v764
      %v888 = vpop.f32.mrb[0].mxu0
      %v889 = vadd.f32 0.0, %v888
      %v890 = vpop.f32.mrb[0].mxu0
      %891 = vmatprep.mubr.f32.mxu0 0.0
      %892 = vmatmul.mubr.f32.gmra.mrb[0].mxu0 %v767
      %v893 = vpop.f32.mrb[0].mxu0
      %v894 = vadd.f32 0.0, %v893
      %v895 = vpop.f32.mrb[0].mxu0
      %896 = vmatprep.mubr.f32.mxu0 0.0
      %897 = vmatmul.mubr.f32.gmra.mrb[0].mxu0 %v770
      %v898 = vpop.f32.mrb[0].mxu0
      %v899 = vadd.f32 0.0, %v898
      %v900 = vpop.f32.mrb[0].mxu0
      %901 = vmatprep.mubr.f32.mxu0 0.0
      %902 = vmatmul.mubr.f32.gmra.mrb[0].mxu0 %v773
      %v903 = vpop.f32.mrb[0].mxu0
      %v904 = vadd.f32 0.0, %v903
      %v905 = vpop.f32.mrb[0].mxu0
      %906 = vmatprep.mubr.f32.mxu0 0.0
      %907 = vmatmul.mubr.f32.gmra.mrb[0].mxu0 %v776
      %v908 = vpop.f32.mrb[0].mxu0
      %v909 = vadd.f32 0.0, %v908
      %v910 = vpop.f32.mrb[0].mxu0
      %911 = vmatprep.mubr.f32.mxu0 0.0
      %912 = vmatmul.mubr.f32.gmra.mrb[0].mxu0 %v779
      %v913 = vpop.f32.mrb[0].mxu0
      %v914 = vadd.f32 0.0, %v913
      %v915 = vpop.f32.mrb[0].mxu0
      %916 = vmatprep.mubr.f32.mxu0 0.0
      %917 = vmatmul.mubr.f32.gmra.mrb[0].mxu0 %v782
      %v918 = vpop.f32.mrb[0].mxu0
      %v919 = vadd.f32 0.0, %v918
      %v920 = vpop.f32.mrb[0].mxu0
      %921 = vmatprep.mubr.f32.mxu0 0.0
      %922 = vmatmul.mubr.f32.gmra.mrb[0].mxu0 %v785
      %v923 = vpop.f32.mrb[0].mxu0
      %v924 = vadd.f32 0.0, %v923
      %v925 = vpop.f32.mrb[0].mxu0
      %926 = vmatprep.mubr.f32.mxu0 0.0
      %927 = vmatmul.mubr.f32.gmra.mrb[0].mxu0 %v788
      %v928 = vpop.f32.mrb[0].mxu0
      %v929 = vadd.f32 0.0, %v928
      %v930 = vpop.f32.mrb[0].mxu0
      %931 = vmatprep.mubr.f32.mxu0 0.0
      %932 = vmatmul.mubr.f32.gmra.mrb[0].mxu0 %v791
      %v933 = vpop.f32.mrb[0].mxu0
      %v934 = vadd.f32 0.0, %v933
      %v935 = vpop.f32.mrb[0].mxu0
      %936 = vmatprep.mubr.f32.mxu0 0.0
      %937 = vmatmul.mubr.f32.gmra.mrb[0].mxu0 %v794
      %v938 = vpop.f32.mrb[0].mxu0
      %v939 = vadd.f32 0.0, %v938
      %v940 = vpop.f32.mrb[0].mxu0
      %941 = vmatprep.mubr.f32.mxu0 0.0
      %942 = vmatmul.mubr.f32.gmra.mrb[0].mxu0 %v797
      %v943 = vpop.f32.mrb[0].mxu0
      %v944 = vadd.f32 0.0, %v943
      %v945 = vpop.f32.mrb[0].mxu0
      %946 = vmatprep.mubr.f32.mxu0 0.0
      %947 = vmatmul.mubr.f32.gmra.mrb[0].mxu0 %v800
      %v948 = vpop.f32.mrb[0].mxu0
      %v949 = vadd.f32 0.0, %v948
      %v950 = vpop.f32.mrb[0].mxu0
      %951 = vmatprep.mubr.f32.mxu0 0.0
      %952 = vmatmul.mubr.f32.gmra.mrb[0].mxu0 %v803
      %v953 = vpop.f32.mrb[0].mxu0
      %v954 = vadd.f32 0.0, %v953
      %v955 = vpop.f32.mrb[0].mxu0
      %956 = vmatprep.mubr.f32.mxu0 0.0
      %957 = vmatmul.mubr.f32.gmra.mrb[0].mxu0 %v806
      %v958 = vpop.f32.mrb[0].mxu0
      %v959 = vadd.f32 0.0, %v958
      %v960 = vpop.f32.mrb[0].mxu0
      %961 = vmatprep.mubr.f32.mxu0 0.0
      %962 = vmatmul.mubr.f32.gmra.mrb[0].mxu0 %v809
      %v963 = vpop.f32.mrb[0].mxu0
      %v964 = vadd.f32 0.0, %v963
      %v965 = vpop.f32.mrb[0].mxu0
      %966 = vmatprep.mubr.f32.mxu0 0.0
      %967 = vmatmul.mubr.f32.gmra.mrb[0].mxu0 %v812
      %v968 = vpop.f32.mrb[0].mxu0
      %v969 = vadd.f32 0.0, %v968
      %v970 = vpop.f32.mrb[0].mxu0
      %971 = vdwg.mxu0
      %v972 = vadd.f32 %v652, %v884
      %v973 = vadd.f32 %v657, %v889
      %v974 = vadd.f32 %v662, %v894
      %v975 = vadd.f32 %v667, %v899
      %v976 = vadd.f32 %v672, %v904
      %v977 = vadd.f32 %v677, %v909
      %v978 = vadd.f32 %v682, %v914
      %v979 = vadd.f32 %v687, %v919
      %v980 = vadd.f32 %v692, %v924
      %v981 = vadd.f32 %v697, %v929
      %v982 = vadd.f32 %v702, %v934
      %v983 = vadd.f32 %v707, %v939
      %v984 = vadd.f32 %v712, %v944
      %v985 = vadd.f32 %v717, %v949
      %v986 = vadd.f32 %v722, %v954
      %v987 = vadd.f32 %v727, %v959
      %v988 = vadd.f32 %v732, %v964
      %v989 = vadd.f32 %v737, %v969
      %v990 = vld [vmem:[%s262 + $0x12] sm:$0xff]
      %v991 = vld [vmem:[%s262 + $0x1a] sm:$0xff]
      %v992 = vld [vmem:[%s262 + $0x22] sm:$0xff]
      %v993 = vld [vmem:[%s262 + $0x2a] sm:$0xff]
      %v994 = vld [vmem:[%s262 + $0x32] sm:$0xff]
      %v995 = vld [vmem:[%s262 + $0x3a] sm:$0xff]
      %v996 = vld [vmem:[%s262 + $0x42] sm:$0xff]
      %v997 = vld [vmem:[%s262 + $0x4a] sm:$0xff]
      %v998 = vld [vmem:[%s262 + $0x52] sm:$0xff]
      %v999 = vld [vmem:[%s262 + $0x5a] sm:$0xff]
      %v1000 = vld [vmem:[%s262 + $0x62] sm:$0xff]
      %v1001 = vld [vmem:[%s262 + $0x6a] sm:$0xff]
      %v1002 = vld [vmem:[%s262 + $0x72] sm:$0xff]
      %v1003 = vld [vmem:[%s262 + $0x7a] sm:$0xff]
      %v1004 = vld [vmem:[%s262 + $0x82] sm:$0xff]
      %v1005 = vld [vmem:[%s262 + $0x8a] sm:$0xff]
      %v1006 = vld [vmem:[%s262 + $0x92] sm:$0xff]
      %v1007 = vld [vmem:[%s262 + $0x9a] sm:$0xff]
      %s1008 = scalar_lea.vmem %s1, 12
      %v1009 = vld [vmem:[%s1008] sm:$0xf]
      %v1011 = vsel %vm314, %v990, 0
      %v1014 = vsel %vm314, %v991, 0
      %v1017 = vsel %vm314, %v992, 0
      %v1020 = vsel %vm314, %v993, 0
      %v1023 = vsel %vm314, %v994, 0
      %v1026 = vsel %vm314, %v995, 0
      %v1029 = vsel %vm314, %v996, 0
      %v1032 = vsel %vm314, %v997, 0
      %v1035 = vsel %vm314, %v998, 0
      %v1038 = vsel %vm314, %v999, 0
      %v1041 = vsel %vm314, %v1000, 0
      %v1044 = vsel %vm314, %v1001, 0
      %v1047 = vsel %vm314, %v1002, 0
      %v1050 = vsel %vm314, %v1003, 0
      %v1053 = vsel %vm314, %v1004, 0
      %v1056 = vsel %vm314, %v1005, 0
      %v1059 = vsel %vm314, %v1006, 0
      %v1062 = vsel %vm314, %v1007, 0
      %v1065 = vsel %vm369, %v1009, 0
      %1067 = vmatprep.subr.mxu0 0.0
      %1068 = vmatpush1.msra.mxu0 %v1065
      %1069 = vmatprep.subr.mxu0 0.0
      %1070 = vmatpush1.msra.mxu0 0.0
      %1071 = vmatprep.subr.mxu0 0.0
      %1072 = vmatpush1.msra.mxu0 0.0
      %1073 = vmatprep.subr.mxu0 0.0
      %1074 = vmatpush1.msra.mxu0 0.0
      %1075 = vmatprep.subr.mxu0 0.0
      %1076 = vmatpush1.msra.mxu0 0.0
      %1077 = vmatprep.subr.mxu0 0.0
      %1078 = vmatpush1.msra.mxu0 0.0
      %1079 = vmatprep.subr.mxu0 0.0
      %1080 = vmatpush1.msra.mxu0 0.0
      %1081 = vmatprep.subr.mxu0 0.0
      %1082 = vmatpush1.msra.mxu0 0.0
      %1083 = vmatprep.subr.mxu0 0.0
      %1084 = vmatpush1.msra.mxu0 0.0
      %1085 = vmatprep.subr.mxu0 0.0
      %1086 = vmatpush1.msra.mxu0 0.0
      %1087 = vmatprep.subr.mxu0 0.0
      %1088 = vmatpush1.msra.mxu0 0.0
      %1089 = vmatprep.subr.mxu0 0.0
      %1090 = vmatpush1.msra.mxu0 0.0
      %1091 = vmatprep.subr.mxu0 0.0
      %1092 = vmatpush1.msra.mxu0 0.0
      %1093 = vmatprep.subr.mxu0 0.0
      %1094 = vmatpush1.msra.mxu0 0.0
      %1095 = vmatprep.subr.mxu0 0.0
      %1096 = vmatpush1.msra.mxu0 0.0
      %1097 = vmatprep.subr.mxu0 0.0
      %1098 = vmatpush1.msra.mxu0 0.0
      %1099 = vmatprep.subr.mxu0 0.0
      %1100 = vmatpush1.msra.mxu0 0.0
      %1101 = vmatprep.subr.mxu0 0.0
      %1102 = vmatpush1.msra.mxu0 0.0
      %1103 = vmatprep.subr.mxu0 0.0
      %1104 = vmatpush1.msra.mxu0 0.0
      %1105 = vmatprep.subr.mxu0 0.0
      %1106 = vmatpush1.msra.mxu0 0.0
      %1107 = vmatprep.subr.mxu0 0.0
      %1108 = vmatpush1.msra.mxu0 0.0
      %1109 = vmatprep.subr.mxu0 0.0
      %1110 = vmatpush1.msra.mxu0 0.0
      %1111 = vmatprep.subr.mxu0 0.0
      %1112 = vmatpush1.msra.mxu0 0.0
      %1113 = vmatprep.subr.mxu0 0.0
      %1114 = vmatpush1.msra.mxu0 0.0
      %1115 = vmatprep.subr.mxu0 0.0
      %1116 = vmatpush1.msra.mxu0 0.0
      %1117 = vmatprep.subr.mxu0 0.0
      %1118 = vmatpush1.msra.mxu0 0.0
      %1119 = vmatprep.subr.mxu0 0.0
      %1120 = vmatpush1.msra.mxu0 0.0
      %1121 = vmatprep.subr.mxu0 0.0
      %1122 = vmatpush1.msra.mxu0 0.0
      %1123 = vmatprep.subr.mxu0 0.0
      %1124 = vmatpush1.msra.mxu0 0.0
      %1125 = vmatprep.subr.mxu0 0.0
      %1126 = vmatpush1.msra.mxu0 0.0
      %1127 = vmatprep.subr.mxu0 0.0
      %1128 = vmatpush1.msra.mxu0 0.0
      %1129 = vmatprep.subr.mxu0 0.0
      %1130 = vmatpush1.msra.mxu0 0.0
      %1131 = vmatprep.mubr.f32.mxu0 0.0
      %1132 = vmatmul.mubr.f32.gmra.mrb[0].mxu0 %v1011
      %v1133 = vpop.f32.mrb[0].mxu0
      %v1134 = vadd.f32 0.0, %v1133
      %v1135 = vpop.f32.mrb[0].mxu0
      %1136 = vmatprep.mubr.f32.mxu0 0.0
      %1137 = vmatmul.mubr.f32.gmra.mrb[0].mxu0 %v1014
      %v1138 = vpop.f32.mrb[0].mxu0
      %v1139 = vadd.f32 0.0, %v1138
      %v1140 = vpop.f32.mrb[0].mxu0
      %1141 = vmatprep.mubr.f32.mxu0 0.0
      %1142 = vmatmul.mubr.f32.gmra.mrb[0].mxu0 %v1017
      %v1143 = vpop.f32.mrb[0].mxu0
      %v1144 = vadd.f32 0.0, %v1143
      %v1145 = vpop.f32.mrb[0].mxu0
      %1146 = vmatprep.mubr.f32.mxu0 0.0
      %1147 = vmatmul.mubr.f32.gmra.mrb[0].mxu0 %v1020
      %v1148 = vpop.f32.mrb[0].mxu0
      %v1149 = vadd.f32 0.0, %v1148
      %v1150 = vpop.f32.mrb[0].mxu0
      %1151 = vmatprep.mubr.f32.mxu0 0.0
      %1152 = vmatmul.mubr.f32.gmra.mrb[0].mxu0 %v1023
      %v1153 = vpop.f32.mrb[0].mxu0
      %v1154 = vadd.f32 0.0, %v1153
      %v1155 = vpop.f32.mrb[0].mxu0
      %1156 = vmatprep.mubr.f32.mxu0 0.0
      %1157 = vmatmul.mubr.f32.gmra.mrb[0].mxu0 %v1026
      %v1158 = vpop.f32.mrb[0].mxu0
      %v1159 = vadd.f32 0.0, %v1158
      %v1160 = vpop.f32.mrb[0].mxu0
      %1161 = vmatprep.mubr.f32.mxu0 0.0
      %1162 = vmatmul.mubr.f32.gmra.mrb[0].mxu0 %v1029
      %v1163 = vpop.f32.mrb[0].mxu0
      %v1164 = vadd.f32 0.0, %v1163
      %v1165 = vpop.f32.mrb[0].mxu0
      %1166 = vmatprep.mubr.f32.mxu0 0.0
      %1167 = vmatmul.mubr.f32.gmra.mrb[0].mxu0 %v1032
      %v1168 = vpop.f32.mrb[0].mxu0
      %v1169 = vadd.f32 0.0, %v1168
      %v1170 = vpop.f32.mrb[0].mxu0
      %1171 = vmatprep.mubr.f32.mxu0 0.0
      %1172 = vmatmul.mubr.f32.gmra.mrb[0].mxu0 %v1035
      %v1173 = vpop.f32.mrb[0].mxu0
      %v1174 = vadd.f32 0.0, %v1173
      %v1175 = vpop.f32.mrb[0].mxu0
      %1176 = vmatprep.mubr.f32.mxu0 0.0
      %1177 = vmatmul.mubr.f32.gmra.mrb[0].mxu0 %v1038
      %v1178 = vpop.f32.mrb[0].mxu0
      %v1179 = vadd.f32 0.0, %v1178
      %v1180 = vpop.f32.mrb[0].mxu0
      %1181 = vmatprep.mubr.f32.mxu0 0.0
      %1182 = vmatmul.mubr.f32.gmra.mrb[0].mxu0 %v1041
      %v1183 = vpop.f32.mrb[0].mxu0
      %v1184 = vadd.f32 0.0, %v1183
      %v1185 = vpop.f32.mrb[0].mxu0
      %1186 = vmatprep.mubr.f32.mxu0 0.0
      %1187 = vmatmul.mubr.f32.gmra.mrb[0].mxu0 %v1044
      %v1188 = vpop.f32.mrb[0].mxu0
      %v1189 = vadd.f32 0.0, %v1188
      %v1190 = vpop.f32.mrb[0].mxu0
      %1191 = vmatprep.mubr.f32.mxu0 0.0
      %1192 = vmatmul.mubr.f32.gmra.mrb[0].mxu0 %v1047
      %v1193 = vpop.f32.mrb[0].mxu0
      %v1194 = vadd.f32 0.0, %v1193
      %v1195 = vpop.f32.mrb[0].mxu0
      %1196 = vmatprep.mubr.f32.mxu0 0.0
      %1197 = vmatmul.mubr.f32.gmra.mrb[0].mxu0 %v1050
      %v1198 = vpop.f32.mrb[0].mxu0
      %v1199 = vadd.f32 0.0, %v1198
      %v1200 = vpop.f32.mrb[0].mxu0
      %1201 = vmatprep.mubr.f32.mxu0 0.0
      %1202 = vmatmul.mubr.f32.gmra.mrb[0].mxu0 %v1053
      %v1203 = vpop.f32.mrb[0].mxu0
      %v1204 = vadd.f32 0.0, %v1203
      %v1205 = vpop.f32.mrb[0].mxu0
      %1206 = vmatprep.mubr.f32.mxu0 0.0
      %1207 = vmatmul.mubr.f32.gmra.mrb[0].mxu0 %v1056
      %v1208 = vpop.f32.mrb[0].mxu0
      %v1209 = vadd.f32 0.0, %v1208
      %v1210 = vpop.f32.mrb[0].mxu0
      %1211 = vmatprep.mubr.f32.mxu0 0.0
      %1212 = vmatmul.mubr.f32.gmra.mrb[0].mxu0 %v1059
      %v1213 = vpop.f32.mrb[0].mxu0
      %v1214 = vadd.f32 0.0, %v1213
      %v1215 = vpop.f32.mrb[0].mxu0
      %1216 = vmatprep.mubr.f32.mxu0 0.0
      %1217 = vmatmul.mubr.f32.gmra.mrb[0].mxu0 %v1062
      %v1218 = vpop.f32.mrb[0].mxu0
      %v1219 = vadd.f32 0.0, %v1218
      %v1220 = vpop.f32.mrb[0].mxu0
      %1221 = vdwg.mxu0
      %v1222 = vadd.f32 %v972, %v1134
      %v1223 = vadd.f32 %v973, %v1139
      %v1224 = vadd.f32 %v974, %v1144
      %v1225 = vadd.f32 %v975, %v1149
      %v1226 = vadd.f32 %v976, %v1154
      %v1227 = vadd.f32 %v977, %v1159
      %v1228 = vadd.f32 %v978, %v1164
      %v1229 = vadd.f32 %v979, %v1169
      %v1230 = vadd.f32 %v980, %v1174
      %v1231 = vadd.f32 %v981, %v1179
      %v1232 = vadd.f32 %v982, %v1184
      %v1233 = vadd.f32 %v983, %v1189
      %v1234 = vadd.f32 %v984, %v1194
      %v1235 = vadd.f32 %v985, %v1199
      %v1236 = vadd.f32 %v986, %v1204
      %v1237 = vadd.f32 %v987, %v1209
      %v1238 = vadd.f32 %v988, %v1214
      %v1239 = vadd.f32 %v989, %v1219
      %v1240 = vld [vmem:[%s262 + $0x13] sm:$0xff]
      %v1241 = vld [vmem:[%s262 + $0x1b] sm:$0xff]
      %v1242 = vld [vmem:[%s262 + $0x23] sm:$0xff]
      %v1243 = vld [vmem:[%s262 + $0x2b] sm:$0xff]
      %v1244 = vld [vmem:[%s262 + $0x33] sm:$0xff]
      %v1245 = vld [vmem:[%s262 + $0x3b] sm:$0xff]
      %v1246 = vld [vmem:[%s262 + $0x43] sm:$0xff]
      %v1247 = vld [vmem:[%s262 + $0x4b] sm:$0xff]
      %v1248 = vld [vmem:[%s262 + $0x53] sm:$0xff]
      %v1249 = vld [vmem:[%s262 + $0x5b] sm:$0xff]
      %v1250 = vld [vmem:[%s262 + $0x63] sm:$0xff]
      %v1251 = vld [vmem:[%s262 + $0x6b] sm:$0xff]
      %v1252 = vld [vmem:[%s262 + $0x73] sm:$0xff]
      %v1253 = vld [vmem:[%s262 + $0x7b] sm:$0xff]
      %v1254 = vld [vmem:[%s262 + $0x83] sm:$0xff]
      %v1255 = vld [vmem:[%s262 + $0x8b] sm:$0xff]
      %v1256 = vld [vmem:[%s262 + $0x93] sm:$0xff]
      %v1257 = vld [vmem:[%s262 + $0x9b] sm:$0xff]
      %s1258 = scalar_lea.vmem %s1, 16
      %v1259 = vld [vmem:[%s1258] sm:$0xf]
      %v1261 = vsel %vm314, %v1240, 0
      %v1264 = vsel %vm314, %v1241, 0
      %v1267 = vsel %vm314, %v1242, 0
      %v1270 = vsel %vm314, %v1243, 0
      %v1273 = vsel %vm314, %v1244, 0
      %v1276 = vsel %vm314, %v1245, 0
      %v1279 = vsel %vm314, %v1246, 0
      %v1282 = vsel %vm314, %v1247, 0
      %v1285 = vsel %vm314, %v1248, 0
      %v1288 = vsel %vm314, %v1249, 0
      %v1291 = vsel %vm314, %v1250, 0
      %v1294 = vsel %vm314, %v1251, 0
      %v1297 = vsel %vm314, %v1252, 0
      %v1300 = vsel %vm314, %v1253, 0
      %v1303 = vsel %vm314, %v1254, 0
      %v1306 = vsel %vm314, %v1255, 0
      %v1309 = vsel %vm314, %v1256, 0
      %v1312 = vsel %vm314, %v1257, 0
      %v1315 = vsel %vm369, %v1259, 0
      %1317 = vmatprep.subr.mxu0 0.0
      %1318 = vmatpush1.msra.mxu0 %v1315
      %1319 = vmatprep.subr.mxu0 0.0
      %1320 = vmatpush1.msra.mxu0 0.0
      %1321 = vmatprep.subr.mxu0 0.0
      %1322 = vmatpush1.msra.mxu0 0.0
      %1323 = vmatprep.subr.mxu0 0.0
      %1324 = vmatpush1.msra.mxu0 0.0
      %1325 = vmatprep.subr.mxu0 0.0
      %1326 = vmatpush1.msra.mxu0 0.0
      %1327 = vmatprep.subr.mxu0 0.0
      %1328 = vmatpush1.msra.mxu0 0.0
      %1329 = vmatprep.subr.mxu0 0.0
      %1330 = vmatpush1.msra.mxu0 0.0
      %1331 = vmatprep.subr.mxu0 0.0
      %1332 = vmatpush1.msra.mxu0 0.0
      %1333 = vmatprep.subr.mxu0 0.0
      %1334 = vmatpush1.msra.mxu0 0.0
      %1335 = vmatprep.subr.mxu0 0.0
      %1336 = vmatpush1.msra.mxu0 0.0
      %1337 = vmatprep.subr.mxu0 0.0
      %1338 = vmatpush1.msra.mxu0 0.0
      %1339 = vmatprep.subr.mxu0 0.0
      %1340 = vmatpush1.msra.mxu0 0.0
      %1341 = vmatprep.subr.mxu0 0.0
      %1342 = vmatpush1.msra.mxu0 0.0
      %1343 = vmatprep.subr.mxu0 0.0
      %1344 = vmatpush1.msra.mxu0 0.0
      %1345 = vmatprep.subr.mxu0 0.0
      %1346 = vmatpush1.msra.mxu0 0.0
      %1347 = vmatprep.subr.mxu0 0.0
      %1348 = vmatpush1.msra.mxu0 0.0
      %1349 = vmatprep.subr.mxu0 0.0
      %1350 = vmatpush1.msra.mxu0 0.0
      %1351 = vmatprep.subr.mxu0 0.0
      %1352 = vmatpush1.msra.mxu0 0.0
      %1353 = vmatprep.subr.mxu0 0.0
      %1354 = vmatpush1.msra.mxu0 0.0
      %1355 = vmatprep.subr.mxu0 0.0
      %1356 = vmatpush1.msra.mxu0 0.0
      %1357 = vmatprep.subr.mxu0 0.0
      %1358 = vmatpush1.msra.mxu0 0.0
      %1359 = vmatprep.subr.mxu0 0.0
      %1360 = vmatpush1.msra.mxu0 0.0
      %1361 = vmatprep.subr.mxu0 0.0
      %1362 = vmatpush1.msra.mxu0 0.0
      %1363 = vmatprep.subr.mxu0 0.0
      %1364 = vmatpush1.msra.mxu0 0.0
      %1365 = vmatprep.subr.mxu0 0.0
      %1366 = vmatpush1.msra.mxu0 0.0
      %1367 = vmatprep.subr.mxu0 0.0
      %1368 = vmatpush1.msra.mxu0 0.0
      %1369 = vmatprep.subr.mxu0 0.0
      %1370 = vmatpush1.msra.mxu0 0.0
      %1371 = vmatprep.subr.mxu0 0.0
      %1372 = vmatpush1.msra.mxu0 0.0
      %1373 = vmatprep.subr.mxu0 0.0
      %1374 = vmatpush1.msra.mxu0 0.0
      %1375 = vmatprep.subr.mxu0 0.0
      %1376 = vmatpush1.msra.mxu0 0.0
      %1377 = vmatprep.subr.mxu0 0.0
      %1378 = vmatpush1.msra.mxu0 0.0
      %1379 = vmatprep.subr.mxu0 0.0
      %1380 = vmatpush1.msra.mxu0 0.0
      %1381 = vmatprep.mubr.f32.mxu0 0.0
      %1382 = vmatmul.mubr.f32.gmra.mrb[0].mxu0 %v1261
      %v1383 = vpop.f32.mrb[0].mxu0
      %v1384 = vadd.f32 0.0, %v1383
      %v1385 = vpop.f32.mrb[0].mxu0
      %1386 = vmatprep.mubr.f32.mxu0 0.0
      %1387 = vmatmul.mubr.f32.gmra.mrb[0].mxu0 %v1264
      %v1388 = vpop.f32.mrb[0].mxu0
      %v1389 = vadd.f32 0.0, %v1388
      %v1390 = vpop.f32.mrb[0].mxu0
      %1391 = vmatprep.mubr.f32.mxu0 0.0
      %1392 = vmatmul.mubr.f32.gmra.mrb[0].mxu0 %v1267
      %v1393 = vpop.f32.mrb[0].mxu0
      %v1394 = vadd.f32 0.0, %v1393
      %v1395 = vpop.f32.mrb[0].mxu0
      %1396 = vmatprep.mubr.f32.mxu0 0.0
      %1397 = vmatmul.mubr.f32.gmra.mrb[0].mxu0 %v1270
      %v1398 = vpop.f32.mrb[0].mxu0
      %v1399 = vadd.f32 0.0, %v1398
      %v1400 = vpop.f32.mrb[0].mxu0
      %1401 = vmatprep.mubr.f32.mxu0 0.0
      %1402 = vmatmul.mubr.f32.gmra.mrb[0].mxu0 %v1273
      %v1403 = vpop.f32.mrb[0].mxu0
      %v1404 = vadd.f32 0.0, %v1403
      %v1405 = vpop.f32.mrb[0].mxu0
      %1406 = vmatprep.mubr.f32.mxu0 0.0
      %1407 = vmatmul.mubr.f32.gmra.mrb[0].mxu0 %v1276
      %v1408 = vpop.f32.mrb[0].mxu0
      %v1409 = vadd.f32 0.0, %v1408
      %v1410 = vpop.f32.mrb[0].mxu0
      %1411 = vmatprep.mubr.f32.mxu0 0.0
      %1412 = vmatmul.mubr.f32.gmra.mrb[0].mxu0 %v1279
      %v1413 = vpop.f32.mrb[0].mxu0
      %v1414 = vadd.f32 0.0, %v1413
      %v1415 = vpop.f32.mrb[0].mxu0
      %1416 = vmatprep.mubr.f32.mxu0 0.0
      %1417 = vmatmul.mubr.f32.gmra.mrb[0].mxu0 %v1282
      %v1418 = vpop.f32.mrb[0].mxu0
      %v1419 = vadd.f32 0.0, %v1418
      %v1420 = vpop.f32.mrb[0].mxu0
      %1421 = vmatprep.mubr.f32.mxu0 0.0
      %1422 = vmatmul.mubr.f32.gmra.mrb[0].mxu0 %v1285
      %v1423 = vpop.f32.mrb[0].mxu0
      %v1424 = vadd.f32 0.0, %v1423
      %v1425 = vpop.f32.mrb[0].mxu0
      %1426 = vmatprep.mubr.f32.mxu0 0.0
      %1427 = vmatmul.mubr.f32.gmra.mrb[0].mxu0 %v1288
      %v1428 = vpop.f32.mrb[0].mxu0
      %v1429 = vadd.f32 0.0, %v1428
      %v1430 = vpop.f32.mrb[0].mxu0
      %1431 = vmatprep.mubr.f32.mxu0 0.0
      %1432 = vmatmul.mubr.f32.gmra.mrb[0].mxu0 %v1291
      %v1433 = vpop.f32.mrb[0].mxu0
      %v1434 = vadd.f32 0.0, %v1433
      %v1435 = vpop.f32.mrb[0].mxu0
      %1436 = vmatprep.mubr.f32.mxu0 0.0
      %1437 = vmatmul.mubr.f32.gmra.mrb[0].mxu0 %v1294
      %v1438 = vpop.f32.mrb[0].mxu0
      %v1439 = vadd.f32 0.0, %v1438
      %v1440 = vpop.f32.mrb[0].mxu0
      %1441 = vmatprep.mubr.f32.mxu0 0.0
      %1442 = vmatmul.mubr.f32.gmra.mrb[0].mxu0 %v1297
      %v1443 = vpop.f32.mrb[0].mxu0
      %v1444 = vadd.f32 0.0, %v1443
      %v1445 = vpop.f32.mrb[0].mxu0
      %1446 = vmatprep.mubr.f32.mxu0 0.0
      %1447 = vmatmul.mubr.f32.gmra.mrb[0].mxu0 %v1300
      %v1448 = vpop.f32.mrb[0].mxu0
      %v1449 = vadd.f32 0.0, %v1448
      %v1450 = vpop.f32.mrb[0].mxu0
      %1451 = vmatprep.mubr.f32.mxu0 0.0
      %1452 = vmatmul.mubr.f32.gmra.mrb[0].mxu0 %v1303
      %v1453 = vpop.f32.mrb[0].mxu0
      %v1454 = vadd.f32 0.0, %v1453
      %v1455 = vpop.f32.mrb[0].mxu0
      %1456 = vmatprep.mubr.f32.mxu0 0.0
      %1457 = vmatmul.mubr.f32.gmra.mrb[0].mxu0 %v1306
      %v1458 = vpop.f32.mrb[0].mxu0
      %v1459 = vadd.f32 0.0, %v1458
      %v1460 = vpop.f32.mrb[0].mxu0
      %1461 = vmatprep.mubr.f32.mxu0 0.0
      %1462 = vmatmul.mubr.f32.gmra.mrb[0].mxu0 %v1309
      %v1463 = vpop.f32.mrb[0].mxu0
      %v1464 = vadd.f32 0.0, %v1463
      %v1465 = vpop.f32.mrb[0].mxu0
      %1466 = vmatprep.mubr.f32.mxu0 0.0
      %1467 = vmatmul.mubr.f32.gmra.mrb[0].mxu0 %v1312
      %v1468 = vpop.f32.mrb[0].mxu0
      %v1469 = vadd.f32 0.0, %v1468
      %v1470 = vpop.f32.mrb[0].mxu0
      %1471 = vdwg.mxu0
      %v1472 = vadd.f32 %v1222, %v1384
      %v1473 = vadd.f32 %v1223, %v1389
      %v1474 = vadd.f32 %v1224, %v1394
      %v1475 = vadd.f32 %v1225, %v1399
      %v1476 = vadd.f32 %v1226, %v1404
      %v1477 = vadd.f32 %v1227, %v1409
      %v1478 = vadd.f32 %v1228, %v1414
      %v1479 = vadd.f32 %v1229, %v1419
      %v1480 = vadd.f32 %v1230, %v1424
      %v1481 = vadd.f32 %v1231, %v1429
      %v1482 = vadd.f32 %v1232, %v1434
      %v1483 = vadd.f32 %v1233, %v1439
      %v1484 = vadd.f32 %v1234, %v1444
      %v1485 = vadd.f32 %v1235, %v1449
      %v1486 = vadd.f32 %v1236, %v1454
      %v1487 = vadd.f32 %v1237, %v1459
      %v1488 = vadd.f32 %v1238, %v1464
      %v1489 = vadd.f32 %v1239, %v1469
      %v1490 = vld [vmem:[%s262 + $0x14] sm:$0xff]
      %v1491 = vld [vmem:[%s262 + $0x1c] sm:$0xff]
      %v1492 = vld [vmem:[%s262 + $0x24] sm:$0xff]
      %v1493 = vld [vmem:[%s262 + $0x2c] sm:$0xff]
      %v1494 = vld [vmem:[%s262 + $0x34] sm:$0xff]
      %v1495 = vld [vmem:[%s262 + $0x3c] sm:$0xff]
      %v1496 = vld [vmem:[%s262 + $0x44] sm:$0xff]
      %v1497 = vld [vmem:[%s262 + $0x4c] sm:$0xff]
      %v1498 = vld [vmem:[%s262 + $0x54] sm:$0xff]
      %v1499 = vld [vmem:[%s262 + $0x5c] sm:$0xff]
      %v1500 = vld [vmem:[%s262 + $0x64] sm:$0xff]
      %v1501 = vld [vmem:[%s262 + $0x6c] sm:$0xff]
      %v1502 = vld [vmem:[%s262 + $0x74] sm:$0xff]
      %v1503 = vld [vmem:[%s262 + $0x7c] sm:$0xff]
      %v1504 = vld [vmem:[%s262 + $0x84] sm:$0xff]
      %v1505 = vld [vmem:[%s262 + $0x8c] sm:$0xff]
      %v1506 = vld [vmem:[%s262 + $0x94] sm:$0xff]
      %v1507 = vld [vmem:[%s262 + $0x9c] sm:$0xff]
      %s1508 = scalar_lea.vmem %s1, 20
      %v1509 = vld [vmem:[%s1508] sm:$0xf]
      %v1511 = vsel %vm314, %v1490, 0
      %v1514 = vsel %vm314, %v1491, 0
      %v1517 = vsel %vm314, %v1492, 0
      %v1520 = vsel %vm314, %v1493, 0
      %v1523 = vsel %vm314, %v1494, 0
      %v1526 = vsel %vm314, %v1495, 0
      %v1529 = vsel %vm314, %v1496, 0
      %v1532 = vsel %vm314, %v1497, 0
      %v1535 = vsel %vm314, %v1498, 0
      %v1538 = vsel %vm314, %v1499, 0
      %v1541 = vsel %vm314, %v1500, 0
      %v1544 = vsel %vm314, %v1501, 0
      %v1547 = vsel %vm314, %v1502, 0
      %v1550 = vsel %vm314, %v1503, 0
      %v1553 = vsel %vm314, %v1504, 0
      %v1556 = vsel %vm314, %v1505, 0
      %v1559 = vsel %vm314, %v1506, 0
      %v1562 = vsel %vm314, %v1507, 0
      %v1565 = vsel %vm369, %v1509, 0
      %1567 = vmatprep.subr.mxu0 0.0
      %1568 = vmatpush1.msra.mxu0 %v1565
      %1569 = vmatprep.subr.mxu0 0.0
      %1570 = vmatpush1.msra.mxu0 0.0
      %1571 = vmatprep.subr.mxu0 0.0
      %1572 = vmatpush1.msra.mxu0 0.0
      %1573 = vmatprep.subr.mxu0 0.0
      %1574 = vmatpush1.msra.mxu0 0.0
      %1575 = vmatprep.subr.mxu0 0.0
      %1576 = vmatpush1.msra.mxu0 0.0
      %1577 = vmatprep.subr.mxu0 0.0
      %1578 = vmatpush1.msra.mxu0 0.0
      %1579 = vmatprep.subr.mxu0 0.0
      %1580 = vmatpush1.msra.mxu0 0.0
      %1581 = vmatprep.subr.mxu0 0.0
      %1582 = vmatpush1.msra.mxu0 0.0
      %1583 = vmatprep.subr.mxu0 0.0
      %1584 = vmatpush1.msra.mxu0 0.0
      %1585 = vmatprep.subr.mxu0 0.0
      %1586 = vmatpush1.msra.mxu0 0.0
      %1587 = vmatprep.subr.mxu0 0.0
      %1588 = vmatpush1.msra.mxu0 0.0
      %1589 = vmatprep.subr.mxu0 0.0
      %1590 = vmatpush1.msra.mxu0 0.0
      %1591 = vmatprep.subr.mxu0 0.0
      %1592 = vmatpush1.msra.mxu0 0.0
      %1593 = vmatprep.subr.mxu0 0.0
      %1594 = vmatpush1.msra.mxu0 0.0
      %1595 = vmatprep.subr.mxu0 0.0
      %1596 = vmatpush1.msra.mxu0 0.0
      %1597 = vmatprep.subr.mxu0 0.0
      %1598 = vmatpush1.msra.mxu0 0.0
      %1599 = vmatprep.subr.mxu0 0.0
      %1600 = vmatpush1.msra.mxu0 0.0
      %1601 = vmatprep.subr.mxu0 0.0
      %1602 = vmatpush1.msra.mxu0 0.0
      %1603 = vmatprep.subr.mxu0 0.0
      %1604 = vmatpush1.msra.mxu0 0.0
      %1605 = vmatprep.subr.mxu0 0.0
      %1606 = vmatpush1.msra.mxu0 0.0
      %1607 = vmatprep.subr.mxu0 0.0
      %1608 = vmatpush1.msra.mxu0 0.0
      %1609 = vmatprep.subr.mxu0 0.0
      %1610 = vmatpush1.msra.mxu0 0.0
      %1611 = vmatprep.subr.mxu0 0.0
      %1612 = vmatpush1.msra.mxu0 0.0
      %1613 = vmatprep.subr.mxu0 0.0
      %1614 = vmatpush1.msra.mxu0 0.0
      %1615 = vmatprep.subr.mxu0 0.0
      %1616 = vmatpush1.msra.mxu0 0.0
      %1617 = vmatprep.subr.mxu0 0.0
      %1618 = vmatpush1.msra.mxu0 0.0
      %1619 = vmatprep.subr.mxu0 0.0
      %1620 = vmatpush1.msra.mxu0 0.0
      %1621 = vmatprep.subr.mxu0 0.0
      %1622 = vmatpush1.msra.mxu0 0.0
      %1623 = vmatprep.subr.mxu0 0.0
      %1624 = vmatpush1.msra.mxu0 0.0
      %1625 = vmatprep.subr.mxu0 0.0
      %1626 = vmatpush1.msra.mxu0 0.0
      %1627 = vmatprep.subr.mxu0 0.0
      %1628 = vmatpush1.msra.mxu0 0.0
      %1629 = vmatprep.subr.mxu0 0.0
      %1630 = vmatpush1.msra.mxu0 0.0
      %1631 = vmatprep.mubr.f32.mxu0 0.0
      %1632 = vmatmul.mubr.f32.gmra.mrb[0].mxu0 %v1511
      %v1633 = vpop.f32.mrb[0].mxu0
      %v1634 = vadd.f32 0.0, %v1633
      %v1635 = vpop.f32.mrb[0].mxu0
      %1636 = vmatprep.mubr.f32.mxu0 0.0
      %1637 = vmatmul.mubr.f32.gmra.mrb[0].mxu0 %v1514
      %v1638 = vpop.f32.mrb[0].mxu0
      %v1639 = vadd.f32 0.0, %v1638
      %v1640 = vpop.f32.mrb[0].mxu0
      %1641 = vmatprep.mubr.f32.mxu0 0.0
      %1642 = vmatmul.mubr.f32.gmra.mrb[0].mxu0 %v1517
      %v1643 = vpop.f32.mrb[0].mxu0
      %v1644 = vadd.f32 0.0, %v1643
      %v1645 = vpop.f32.mrb[0].mxu0
      %1646 = vmatprep.mubr.f32.mxu0 0.0
      %1647 = vmatmul.mubr.f32.gmra.mrb[0].mxu0 %v1520
      %v1648 = vpop.f32.mrb[0].mxu0
      %v1649 = vadd.f32 0.0, %v1648
      %v1650 = vpop.f32.mrb[0].mxu0
      %1651 = vmatprep.mubr.f32.mxu0 0.0
      %1652 = vmatmul.mubr.f32.gmra.mrb[0].mxu0 %v1523
      %v1653 = vpop.f32.mrb[0].mxu0
      %v1654 = vadd.f32 0.0, %v1653
      %v1655 = vpop.f32.mrb[0].mxu0
      %1656 = vmatprep.mubr.f32.mxu0 0.0
      %1657 = vmatmul.mubr.f32.gmra.mrb[0].mxu0 %v1526
      %v1658 = vpop.f32.mrb[0].mxu0
      %v1659 = vadd.f32 0.0, %v1658
      %v1660 = vpop.f32.mrb[0].mxu0
      %1661 = vmatprep.mubr.f32.mxu0 0.0
      %1662 = vmatmul.mubr.f32.gmra.mrb[0].mxu0 %v1529
      %v1663 = vpop.f32.mrb[0].mxu0
      %v1664 = vadd.f32 0.0, %v1663
      %v1665 = vpop.f32.mrb[0].mxu0
      %1666 = vmatprep.mubr.f32.mxu0 0.0
      %1667 = vmatmul.mubr.f32.gmra.mrb[0].mxu0 %v1532
      %v1668 = vpop.f32.mrb[0].mxu0
      %v1669 = vadd.f32 0.0, %v1668
      %v1670 = vpop.f32.mrb[0].mxu0
      %1671 = vmatprep.mubr.f32.mxu0 0.0
      %1672 = vmatmul.mubr.f32.gmra.mrb[0].mxu0 %v1535
      %v1673 = vpop.f32.mrb[0].mxu0
      %v1674 = vadd.f32 0.0, %v1673
      %v1675 = vpop.f32.mrb[0].mxu0
      %1676 = vmatprep.mubr.f32.mxu0 0.0
      %1677 = vmatmul.mubr.f32.gmra.mrb[0].mxu0 %v1538
      %v1678 = vpop.f32.mrb[0].mxu0
      %v1679 = vadd.f32 0.0, %v1678
      %v1680 = vpop.f32.mrb[0].mxu0
      %1681 = vmatprep.mubr.f32.mxu0 0.0
      %1682 = vmatmul.mubr.f32.gmra.mrb[0].mxu0 %v1541
      %v1683 = vpop.f32.mrb[0].mxu0
      %v1684 = vadd.f32 0.0, %v1683
      %v1685 = vpop.f32.mrb[0].mxu0
      %1686 = vmatprep.mubr.f32.mxu0 0.0
      %1687 = vmatmul.mubr.f32.gmra.mrb[0].mxu0 %v1544
      %v1688 = vpop.f32.mrb[0].mxu0
      %v1689 = vadd.f32 0.0, %v1688
      %v1690 = vpop.f32.mrb[0].mxu0
      %1691 = vmatprep.mubr.f32.mxu0 0.0
      %1692 = vmatmul.mubr.f32.gmra.mrb[0].mxu0 %v1547
      %v1693 = vpop.f32.mrb[0].mxu0
      %v1694 = vadd.f32 0.0, %v1693
      %v1695 = vpop.f32.mrb[0].mxu0
      %1696 = vmatprep.mubr.f32.mxu0 0.0
      %1697 = vmatmul.mubr.f32.gmra.mrb[0].mxu0 %v1550
      %v1698 = vpop.f32.mrb[0].mxu0
      %v1699 = vadd.f32 0.0, %v1698
      %v1700 = vpop.f32.mrb[0].mxu0
      %1701 = vmatprep.mubr.f32.mxu0 0.0
      %1702 = vmatmul.mubr.f32.gmra.mrb[0].mxu0 %v1553
      %v1703 = vpop.f32.mrb[0].mxu0
      %v1704 = vadd.f32 0.0, %v1703
      %v1705 = vpop.f32.mrb[0].mxu0
      %1706 = vmatprep.mubr.f32.mxu0 0.0
      %1707 = vmatmul.mubr.f32.gmra.mrb[0].mxu0 %v1556
      %v1708 = vpop.f32.mrb[0].mxu0
      %v1709 = vadd.f32 0.0, %v1708
      %v1710 = vpop.f32.mrb[0].mxu0
      %1711 = vmatprep.mubr.f32.mxu0 0.0
      %1712 = vmatmul.mubr.f32.gmra.mrb[0].mxu0 %v1559
      %v1713 = vpop.f32.mrb[0].mxu0
      %v1714 = vadd.f32 0.0, %v1713
      %v1715 = vpop.f32.mrb[0].mxu0
      %1716 = vmatprep.mubr.f32.mxu0 0.0
      %1717 = vmatmul.mubr.f32.gmra.mrb[0].mxu0 %v1562
      %v1718 = vpop.f32.mrb[0].mxu0
      %v1719 = vadd.f32 0.0, %v1718
      %v1720 = vpop.f32.mrb[0].mxu0
      %1721 = vdwg.mxu0
      %v1722 = vadd.f32 %v1472, %v1634
      %v1723 = vadd.f32 %v1473, %v1639
      %v1724 = vadd.f32 %v1474, %v1644
      %v1725 = vadd.f32 %v1475, %v1649
      %v1726 = vadd.f32 %v1476, %v1654
      %v1727 = vadd.f32 %v1477, %v1659
      %v1728 = vadd.f32 %v1478, %v1664
      %v1729 = vadd.f32 %v1479, %v1669
      %v1730 = vadd.f32 %v1480, %v1674
      %v1731 = vadd.f32 %v1481, %v1679
      %v1732 = vadd.f32 %v1482, %v1684
      %v1733 = vadd.f32 %v1483, %v1689
      %v1734 = vadd.f32 %v1484, %v1694
      %v1735 = vadd.f32 %v1485, %v1699
      %v1736 = vadd.f32 %v1486, %v1704
      %v1737 = vadd.f32 %v1487, %v1709
      %v1738 = vadd.f32 %v1488, %v1714
      %v1739 = vadd.f32 %v1489, %v1719
      %v1740 = vld [vmem:[%s262 + $0x24] sm:$0xff]
      %v1741 = vld [vmem:[%s262 + $0x2c] sm:$0xff]
      %v1742 = vld [vmem:[%s262 + $0x34] sm:$0xff]
      %v1743 = vld [vmem:[%s262 + $0x3c] sm:$0xff]
      %v1744 = vld [vmem:[%s262 + $0x44] sm:$0xff]
      %v1745 = vld [vmem:[%s262 + $0x4c] sm:$0xff]
      %v1746 = vld [vmem:[%s262 + $0x54] sm:$0xff]
      %v1747 = vld [vmem:[%s262 + $0x5c] sm:$0xff]
      %v1748 = vld [vmem:[%s262 + $0x64] sm:$0xff]
      %v1749 = vld [vmem:[%s262 + $0x6c] sm:$0xff]
      %v1750 = vld [vmem:[%s262 + $0x74] sm:$0xff]
      %v1751 = vld [vmem:[%s262 + $0x7c] sm:$0xff]
      %v1752 = vld [vmem:[%s262 + $0x84] sm:$0xff]
      %v1753 = vld [vmem:[%s262 + $0x8c] sm:$0xff]
      %v1754 = vld [vmem:[%s262 + $0x94] sm:$0xff]
      %v1755 = vld [vmem:[%s262 + $0x9c] sm:$0xff]
      %v1756 = vld [vmem:[%s262 + $0xa4] sm:$0xff]
      %v1757 = vld [vmem:[%s262 + $0xac] sm:$0xff]
      %s1758 = scalar_lea.vmem %s1, 24
      %v1759 = vld [vmem:[%s1758] sm:$0xf]
      %v1761 = vsel %vm314, %v1740, 0
      %v1764 = vsel %vm314, %v1741, 0
      %v1767 = vsel %vm314, %v1742, 0
      %v1770 = vsel %vm314, %v1743, 0
      %v1773 = vsel %vm314, %v1744, 0
      %v1776 = vsel %vm314, %v1745, 0
      %v1779 = vsel %vm314, %v1746, 0
      %v1782 = vsel %vm314, %v1747, 0
      %v1785 = vsel %vm314, %v1748, 0
      %v1788 = vsel %vm314, %v1749, 0
      %v1791 = vsel %vm314, %v1750, 0
      %v1794 = vsel %vm314, %v1751, 0
      %v1797 = vsel %vm314, %v1752, 0
      %v1800 = vsel %vm314, %v1753, 0
      %v1803 = vsel %vm314, %v1754, 0
      %v1806 = vsel %vm314, %v1755, 0
      %v1809 = vsel %vm314, %v1756, 0
      %v1812 = vsel %vm314, %v1757, 0
      %v1815 = vsel %vm369, %v1759, 0
      %1817 = vmatprep.subr.mxu0 0.0
      %1818 = vmatpush1.msra.mxu0 %v1815
      %1819 = vmatprep.subr.mxu0 0.0
      %1820 = vmatpush1.msra.mxu0 0.0
      %1821 = vmatprep.subr.mxu0 0.0
      %1822 = vmatpush1.msra.mxu0 0.0
      %1823 = vmatprep.subr.mxu0 0.0
      %1824 = vmatpush1.msra.mxu0 0.0
      %1825 = vmatprep.subr.mxu0 0.0
      %1826 = vmatpush1.msra.mxu0 0.0
      %1827 = vmatprep.subr.mxu0 0.0
      %1828 = vmatpush1.msra.mxu0 0.0
      %1829 = vmatprep.subr.mxu0 0.0
      %1830 = vmatpush1.msra.mxu0 0.0
      %1831 = vmatprep.subr.mxu0 0.0
      %1832 = vmatpush1.msra.mxu0 0.0
      %1833 = vmatprep.subr.mxu0 0.0
      %1834 = vmatpush1.msra.mxu0 0.0
      %1835 = vmatprep.subr.mxu0 0.0
      %1836 = vmatpush1.msra.mxu0 0.0
      %1837 = vmatprep.subr.mxu0 0.0
      %1838 = vmatpush1.msra.mxu0 0.0
      %1839 = vmatprep.subr.mxu0 0.0
      %1840 = vmatpush1.msra.mxu0 0.0
      %1841 = vmatprep.subr.mxu0 0.0
      %1842 = vmatpush1.msra.mxu0 0.0
      %1843 = vmatprep.subr.mxu0 0.0
      %1844 = vmatpush1.msra.mxu0 0.0
      %1845 = vmatprep.subr.mxu0 0.0
      %1846 = vmatpush1.msra.mxu0 0.0
      %1847 = vmatprep.subr.mxu0 0.0
      %1848 = vmatpush1.msra.mxu0 0.0
      %1849 = vmatprep.subr.mxu0 0.0
      %1850 = vmatpush1.msra.mxu0 0.0
      %1851 = vmatprep.subr.mxu0 0.0
      %1852 = vmatpush1.msra.mxu0 0.0
      %1853 = vmatprep.subr.mxu0 0.0
      %1854 = vmatpush1.msra.mxu0 0.0
      %1855 = vmatprep.subr.mxu0 0.0
      %1856 = vmatpush1.msra.mxu0 0.0
      %1857 = vmatprep.subr.mxu0 0.0
      %1858 = vmatpush1.msra.mxu0 0.0
      %1859 = vmatprep.subr.mxu0 0.0
      %1860 = vmatpush1.msra.mxu0 0.0
      %1861 = vmatprep.subr.mxu0 0.0
      %1862 = vmatpush1.msra.mxu0 0.0
      %1863 = vmatprep.subr.mxu0 0.0
      %1864 = vmatpush1.msra.mxu0 0.0
      %1865 = vmatprep.subr.mxu0 0.0
      %1866 = vmatpush1.msra.mxu0 0.0
      %1867 = vmatprep.subr.mxu0 0.0
      %1868 = vmatpush1.msra.mxu0 0.0
      %1869 = vmatprep.subr.mxu0 0.0
      %1870 = vmatpush1.msra.mxu0 0.0
      %1871 = vmatprep.subr.mxu0 0.0
      %1872 = vmatpush1.msra.mxu0 0.0
      %1873 = vmatprep.subr.mxu0 0.0
      %1874 = vmatpush1.msra.mxu0 0.0
      %1875 = vmatprep.subr.mxu0 0.0
      %1876 = vmatpush1.msra.mxu0 0.0
      %1877 = vmatprep.subr.mxu0 0.0
      %1878 = vmatpush1.msra.mxu0 0.0
      %1879 = vmatprep.subr.mxu0 0.0
      %1880 = vmatpush1.msra.mxu0 0.0
      %1881 = vmatprep.mubr.f32.mxu0 0.0
      %1882 = vmatmul.mubr.f32.gmra.mrb[0].mxu0 %v1761
      %v1883 = vpop.f32.mrb[0].mxu0
      %v1884 = vadd.f32 0.0, %v1883
      %v1885 = vpop.f32.mrb[0].mxu0
      %1886 = vmatprep.mubr.f32.mxu0 0.0
      %1887 = vmatmul.mubr.f32.gmra.mrb[0].mxu0 %v1764
      %v1888 = vpop.f32.mrb[0].mxu0
      %v1889 = vadd.f32 0.0, %v1888
      %v1890 = vpop.f32.mrb[0].mxu0
      %1891 = vmatprep.mubr.f32.mxu0 0.0
      %1892 = vmatmul.mubr.f32.gmra.mrb[0].mxu0 %v1767
      %v1893 = vpop.f32.mrb[0].mxu0
      %v1894 = vadd.f32 0.0, %v1893
      %v1895 = vpop.f32.mrb[0].mxu0
      %1896 = vmatprep.mubr.f32.mxu0 0.0
      %1897 = vmatmul.mubr.f32.gmra.mrb[0].mxu0 %v1770
      %v1898 = vpop.f32.mrb[0].mxu0
      %v1899 = vadd.f32 0.0, %v1898
      %v1900 = vpop.f32.mrb[0].mxu0
      %1901 = vmatprep.mubr.f32.mxu0 0.0
      %1902 = vmatmul.mubr.f32.gmra.mrb[0].mxu0 %v1773
      %v1903 = vpop.f32.mrb[0].mxu0
      %v1904 = vadd.f32 0.0, %v1903
      %v1905 = vpop.f32.mrb[0].mxu0
      %1906 = vmatprep.mubr.f32.mxu0 0.0
      %1907 = vmatmul.mubr.f32.gmra.mrb[0].mxu0 %v1776
      %v1908 = vpop.f32.mrb[0].mxu0
      %v1909 = vadd.f32 0.0, %v1908
      %v1910 = vpop.f32.mrb[0].mxu0
      %1911 = vmatprep.mubr.f32.mxu0 0.0
      %1912 = vmatmul.mubr.f32.gmra.mrb[0].mxu0 %v1779
      %v1913 = vpop.f32.mrb[0].mxu0
      %v1914 = vadd.f32 0.0, %v1913
      %v1915 = vpop.f32.mrb[0].mxu0
      %1916 = vmatprep.mubr.f32.mxu0 0.0
      %1917 = vmatmul.mubr.f32.gmra.mrb[0].mxu0 %v1782
      %v1918 = vpop.f32.mrb[0].mxu0
      %v1919 = vadd.f32 0.0, %v1918
      %v1920 = vpop.f32.mrb[0].mxu0
      %1921 = vmatprep.mubr.f32.mxu0 0.0
      %1922 = vmatmul.mubr.f32.gmra.mrb[0].mxu0 %v1785
      %v1923 = vpop.f32.mrb[0].mxu0
      %v1924 = vadd.f32 0.0, %v1923
      %v1925 = vpop.f32.mrb[0].mxu0
      %1926 = vmatprep.mubr.f32.mxu0 0.0
      %1927 = vmatmul.mubr.f32.gmra.mrb[0].mxu0 %v1788
      %v1928 = vpop.f32.mrb[0].mxu0
      %v1929 = vadd.f32 0.0, %v1928
      %v1930 = vpop.f32.mrb[0].mxu0
      %1931 = vmatprep.mubr.f32.mxu0 0.0
      %1932 = vmatmul.mubr.f32.gmra.mrb[0].mxu0 %v1791
      %v1933 = vpop.f32.mrb[0].mxu0
      %v1934 = vadd.f32 0.0, %v1933
      %v1935 = vpop.f32.mrb[0].mxu0
      %1936 = vmatprep.mubr.f32.mxu0 0.0
      %1937 = vmatmul.mubr.f32.gmra.mrb[0].mxu0 %v1794
      %v1938 = vpop.f32.mrb[0].mxu0
      %v1939 = vadd.f32 0.0, %v1938
      %v1940 = vpop.f32.mrb[0].mxu0
      %1941 = vmatprep.mubr.f32.mxu0 0.0
      %1942 = vmatmul.mubr.f32.gmra.mrb[0].mxu0 %v1797
      %v1943 = vpop.f32.mrb[0].mxu0
      %v1944 = vadd.f32 0.0, %v1943
      %v1945 = vpop.f32.mrb[0].mxu0
      %1946 = vmatprep.mubr.f32.mxu0 0.0
      %1947 = vmatmul.mubr.f32.gmra.mrb[0].mxu0 %v1800
      %v1948 = vpop.f32.mrb[0].mxu0
      %v1949 = vadd.f32 0.0, %v1948
      %v1950 = vpop.f32.mrb[0].mxu0
      %1951 = vmatprep.mubr.f32.mxu0 0.0
      %1952 = vmatmul.mubr.f32.gmra.mrb[0].mxu0 %v1803
      %v1953 = vpop.f32.mrb[0].mxu0
      %v1954 = vadd.f32 0.0, %v1953
      %v1955 = vpop.f32.mrb[0].mxu0
      %1956 = vmatprep.mubr.f32.mxu0 0.0
      %1957 = vmatmul.mubr.f32.gmra.mrb[0].mxu0 %v1806
      %v1958 = vpop.f32.mrb[0].mxu0
      %v1959 = vadd.f32 0.0, %v1958
      %v1960 = vpop.f32.mrb[0].mxu0
      %1961 = vmatprep.mubr.f32.mxu0 0.0
      %1962 = vmatmul.mubr.f32.gmra.mrb[0].mxu0 %v1809
      %v1963 = vpop.f32.mrb[0].mxu0
      %v1964 = vadd.f32 0.0, %v1963
      %v1965 = vpop.f32.mrb[0].mxu0
      %1966 = vmatprep.mubr.f32.mxu0 0.0
      %1967 = vmatmul.mubr.f32.gmra.mrb[0].mxu0 %v1812
      %v1968 = vpop.f32.mrb[0].mxu0
      %v1969 = vadd.f32 0.0, %v1968
      %v1970 = vpop.f32.mrb[0].mxu0
      %1971 = vdwg.mxu0
      %v1972 = vadd.f32 %v1722, %v1884
      %v1973 = vadd.f32 %v1723, %v1889
      %v1974 = vadd.f32 %v1724, %v1894
      %v1975 = vadd.f32 %v1725, %v1899
      %v1976 = vadd.f32 %v1726, %v1904
      %v1977 = vadd.f32 %v1727, %v1909
      %v1978 = vadd.f32 %v1728, %v1914
      %v1979 = vadd.f32 %v1729, %v1919
      %v1980 = vadd.f32 %v1730, %v1924
      %v1981 = vadd.f32 %v1731, %v1929
      %v1982 = vadd.f32 %v1732, %v1934
      %v1983 = vadd.f32 %v1733, %v1939
      %v1984 = vadd.f32 %v1734, %v1944
      %v1985 = vadd.f32 %v1735, %v1949
      %v1986 = vadd.f32 %v1736, %v1954
      %v1987 = vadd.f32 %v1737, %v1959
      %v1988 = vadd.f32 %v1738, %v1964
      %v1989 = vadd.f32 %v1739, %v1969
      %v1990 = vld [vmem:[%s262 + $0x25] sm:$0xff]
      %v1991 = vld [vmem:[%s262 + $0x2d] sm:$0xff]
      %v1992 = vld [vmem:[%s262 + $0x35] sm:$0xff]
      %v1993 = vld [vmem:[%s262 + $0x3d] sm:$0xff]
      %v1994 = vld [vmem:[%s262 + $0x45] sm:$0xff]
      %v1995 = vld [vmem:[%s262 + $0x4d] sm:$0xff]
      %v1996 = vld [vmem:[%s262 + $0x55] sm:$0xff]
      %v1997 = vld [vmem:[%s262 + $0x5d] sm:$0xff]
      %v1998 = vld [vmem:[%s262 + $0x65] sm:$0xff]
      %v1999 = vld [vmem:[%s262 + $0x6d] sm:$0xff]
      %v2000 = vld [vmem:[%s262 + $0x75] sm:$0xff]
      %v2001 = vld [vmem:[%s262 + $0x7d] sm:$0xff]
      %v2002 = vld [vmem:[%s262 + $0x85] sm:$0xff]
      %v2003 = vld [vmem:[%s262 + $0x8d] sm:$0xff]
      %v2004 = vld [vmem:[%s262 + $0x95] sm:$0xff]
      %v2005 = vld [vmem:[%s262 + $0x9d] sm:$0xff]
      %v2006 = vld [vmem:[%s262 + $0xa5] sm:$0xff]
      %v2007 = vld [vmem:[%s262 + $0xad] sm:$0xff]
      %s2008 = scalar_lea.vmem %s1, 28
      %v2009 = vld [vmem:[%s2008] sm:$0xf]
      %v2011 = vsel %vm314, %v1990, 0
      %v2014 = vsel %vm314, %v1991, 0
      %v2017 = vsel %vm314, %v1992, 0
      %v2020 = vsel %vm314, %v1993, 0
      %v2023 = vsel %vm314, %v1994, 0
      %v2026 = vsel %vm314, %v1995, 0
      %v2029 = vsel %vm314, %v1996, 0
      %v2032 = vsel %vm314, %v1997, 0
      %v2035 = vsel %vm314, %v1998, 0
      %v2038 = vsel %vm314, %v1999, 0
      %v2041 = vsel %vm314, %v2000, 0
      %v2044 = vsel %vm314, %v2001, 0
      %v2047 = vsel %vm314, %v2002, 0
      %v2050 = vsel %vm314, %v2003, 0
      %v2053 = vsel %vm314, %v2004, 0
      %v2056 = vsel %vm314, %v2005, 0
      %v2059 = vsel %vm314, %v2006, 0
      %v2062 = vsel %vm314, %v2007, 0
      %v2065 = vsel %vm369, %v2009, 0
      %2067 = vmatprep.subr.mxu0 0.0
      %2068 = vmatpush1.msra.mxu0 %v2065
      %2069 = vmatprep.subr.mxu0 0.0
      %2070 = vmatpush1.msra.mxu0 0.0
      %2071 = vmatprep.subr.mxu0 0.0
      %2072 = vmatpush1.msra.mxu0 0.0
      %2073 = vmatprep.subr.mxu0 0.0
      %2074 = vmatpush1.msra.mxu0 0.0
      %2075 = vmatprep.subr.mxu0 0.0
      %2076 = vmatpush1.msra.mxu0 0.0
      %2077 = vmatprep.subr.mxu0 0.0
      %2078 = vmatpush1.msra.mxu0 0.0
      %2079 = vmatprep.subr.mxu0 0.0
      %2080 = vmatpush1.msra.mxu0 0.0
      %2081 = vmatprep.subr.mxu0 0.0
      %2082 = vmatpush1.msra.mxu0 0.0
      %2083 = vmatprep.subr.mxu0 0.0
      %2084 = vmatpush1.msra.mxu0 0.0
      %2085 = vmatprep.subr.mxu0 0.0
      %2086 = vmatpush1.msra.mxu0 0.0
      %2087 = vmatprep.subr.mxu0 0.0
      %2088 = vmatpush1.msra.mxu0 0.0
      %2089 = vmatprep.subr.mxu0 0.0
      %2090 = vmatpush1.msra.mxu0 0.0
      %2091 = vmatprep.subr.mxu0 0.0
      %2092 = vmatpush1.msra.mxu0 0.0
      %2093 = vmatprep.subr.mxu0 0.0
      %2094 = vmatpush1.msra.mxu0 0.0
      %2095 = vmatprep.subr.mxu0 0.0
      %2096 = vmatpush1.msra.mxu0 0.0
      %2097 = vmatprep.subr.mxu0 0.0
      %2098 = vmatpush1.msra.mxu0 0.0
      %2099 = vmatprep.subr.mxu0 0.0
      %2100 = vmatpush1.msra.mxu0 0.0
      %2101 = vmatprep.subr.mxu0 0.0
      %2102 = vmatpush1.msra.mxu0 0.0
      %2103 = vmatprep.subr.mxu0 0.0
      %2104 = vmatpush1.msra.mxu0 0.0
      %2105 = vmatprep.subr.mxu0 0.0
      %2106 = vmatpush1.msra.mxu0 0.0
      %2107 = vmatprep.subr.mxu0 0.0
      %2108 = vmatpush1.msra.mxu0 0.0
      %2109 = vmatprep.subr.mxu0 0.0
      %2110 = vmatpush1.msra.mxu0 0.0
      %2111 = vmatprep.subr.mxu0 0.0
      %2112 = vmatpush1.msra.mxu0 0.0
      %2113 = vmatprep.subr.mxu0 0.0
      %2114 = vmatpush1.msra.mxu0 0.0
      %2115 = vmatprep.subr.mxu0 0.0
      %2116 = vmatpush1.msra.mxu0 0.0
      %2117 = vmatprep.subr.mxu0 0.0
      %2118 = vmatpush1.msra.mxu0 0.0
      %2119 = vmatprep.subr.mxu0 0.0
      %2120 = vmatpush1.msra.mxu0 0.0
      %2121 = vmatprep.subr.mxu0 0.0
      %2122 = vmatpush1.msra.mxu0 0.0
      %2123 = vmatprep.subr.mxu0 0.0
      %2124 = vmatpush1.msra.mxu0 0.0
      %2125 = vmatprep.subr.mxu0 0.0
      %2126 = vmatpush1.msra.mxu0 0.0
      %2127 = vmatprep.subr.mxu0 0.0
      %2128 = vmatpush1.msra.mxu0 0.0
      %2129 = vmatprep.subr.mxu0 0.0
      %2130 = vmatpush1.msra.mxu0 0.0
      %2131 = vmatprep.mubr.f32.mxu0 0.0
      %2132 = vmatmul.mubr.f32.gmra.mrb[0].mxu0 %v2011
      %v2133 = vpop.f32.mrb[0].mxu0
      %v2134 = vadd.f32 0.0, %v2133
      %v2135 = vpop.f32.mrb[0].mxu0
      %2136 = vmatprep.mubr.f32.mxu0 0.0
      %2137 = vmatmul.mubr.f32.gmra.mrb[0].mxu0 %v2014
      %v2138 = vpop.f32.mrb[0].mxu0
      %v2139 = vadd.f32 0.0, %v2138
      %v2140 = vpop.f32.mrb[0].mxu0
      %2141 = vmatprep.mubr.f32.mxu0 0.0
      %2142 = vmatmul.mubr.f32.gmra.mrb[0].mxu0 %v2017
      %v2143 = vpop.f32.mrb[0].mxu0
      %v2144 = vadd.f32 0.0, %v2143
      %v2145 = vpop.f32.mrb[0].mxu0
      %2146 = vmatprep.mubr.f32.mxu0 0.0
      %2147 = vmatmul.mubr.f32.gmra.mrb[0].mxu0 %v2020
      %v2148 = vpop.f32.mrb[0].mxu0
      %v2149 = vadd.f32 0.0, %v2148
      %v2150 = vpop.f32.mrb[0].mxu0
      %2151 = vmatprep.mubr.f32.mxu0 0.0
      %2152 = vmatmul.mubr.f32.gmra.mrb[0].mxu0 %v2023
      %v2153 = vpop.f32.mrb[0].mxu0
      %v2154 = vadd.f32 0.0, %v2153
      %v2155 = vpop.f32.mrb[0].mxu0
      %2156 = vmatprep.mubr.f32.mxu0 0.0
      %2157 = vmatmul.mubr.f32.gmra.mrb[0].mxu0 %v2026
      %v2158 = vpop.f32.mrb[0].mxu0
      %v2159 = vadd.f32 0.0, %v2158
      %v2160 = vpop.f32.mrb[0].mxu0
      %2161 = vmatprep.mubr.f32.mxu0 0.0
      %2162 = vmatmul.mubr.f32.gmra.mrb[0].mxu0 %v2029
      %v2163 = vpop.f32.mrb[0].mxu0
      %v2164 = vadd.f32 0.0, %v2163
      %v2165 = vpop.f32.mrb[0].mxu0
      %2166 = vmatprep.mubr.f32.mxu0 0.0
      %2167 = vmatmul.mubr.f32.gmra.mrb[0].mxu0 %v2032
      %v2168 = vpop.f32.mrb[0].mxu0
      %v2169 = vadd.f32 0.0, %v2168
      %v2170 = vpop.f32.mrb[0].mxu0
      %2171 = vmatprep.mubr.f32.mxu0 0.0
      %2172 = vmatmul.mubr.f32.gmra.mrb[0].mxu0 %v2035
      %v2173 = vpop.f32.mrb[0].mxu0
      %v2174 = vadd.f32 0.0, %v2173
      %v2175 = vpop.f32.mrb[0].mxu0
      %2176 = vmatprep.mubr.f32.mxu0 0.0
      %2177 = vmatmul.mubr.f32.gmra.mrb[0].mxu0 %v2038
      %v2178 = vpop.f32.mrb[0].mxu0
      %v2179 = vadd.f32 0.0, %v2178
      %v2180 = vpop.f32.mrb[0].mxu0
      %2181 = vmatprep.mubr.f32.mxu0 0.0
      %2182 = vmatmul.mubr.f32.gmra.mrb[0].mxu0 %v2041
      %v2183 = vpop.f32.mrb[0].mxu0
      %v2184 = vadd.f32 0.0, %v2183
      %v2185 = vpop.f32.mrb[0].mxu0
      %2186 = vmatprep.mubr.f32.mxu0 0.0
      %2187 = vmatmul.mubr.f32.gmra.mrb[0].mxu0 %v2044
      %v2188 = vpop.f32.mrb[0].mxu0
      %v2189 = vadd.f32 0.0, %v2188
      %v2190 = vpop.f32.mrb[0].mxu0
      %2191 = vmatprep.mubr.f32.mxu0 0.0
      %2192 = vmatmul.mubr.f32.gmra.mrb[0].mxu0 %v2047
      %v2193 = vpop.f32.mrb[0].mxu0
      %v2194 = vadd.f32 0.0, %v2193
      %v2195 = vpop.f32.mrb[0].mxu0
      %2196 = vmatprep.mubr.f32.mxu0 0.0
      %2197 = vmatmul.mubr.f32.gmra.mrb[0].mxu0 %v2050
      %v2198 = vpop.f32.mrb[0].mxu0
      %v2199 = vadd.f32 0.0, %v2198
      %v2200 = vpop.f32.mrb[0].mxu0
      %2201 = vmatprep.mubr.f32.mxu0 0.0
      %2202 = vmatmul.mubr.f32.gmra.mrb[0].mxu0 %v2053
      %v2203 = vpop.f32.mrb[0].mxu0
      %v2204 = vadd.f32 0.0, %v2203
      %v2205 = vpop.f32.mrb[0].mxu0
      %2206 = vmatprep.mubr.f32.mxu0 0.0
      %2207 = vmatmul.mubr.f32.gmra.mrb[0].mxu0 %v2056
      %v2208 = vpop.f32.mrb[0].mxu0
      %v2209 = vadd.f32 0.0, %v2208
      %v2210 = vpop.f32.mrb[0].mxu0
      %2211 = vmatprep.mubr.f32.mxu0 0.0
      %2212 = vmatmul.mubr.f32.gmra.mrb[0].mxu0 %v2059
      %v2213 = vpop.f32.mrb[0].mxu0
      %v2214 = vadd.f32 0.0, %v2213
      %v2215 = vpop.f32.mrb[0].mxu0
      %2216 = vmatprep.mubr.f32.mxu0 0.0
      %2217 = vmatmul.mubr.f32.gmra.mrb[0].mxu0 %v2062
      %v2218 = vpop.f32.mrb[0].mxu0
      %v2219 = vadd.f32 0.0, %v2218
      %v2220 = vpop.f32.mrb[0].mxu0
      %2221 = vdwg.mxu0
      %v2222 = vadd.f32 %v1972, %v2134
      %v2223 = vadd.f32 %v1973, %v2139
      %v2224 = vadd.f32 %v1974, %v2144
      %v2225 = vadd.f32 %v1975, %v2149
      %v2226 = vadd.f32 %v1976, %v2154
      %v2227 = vadd.f32 %v1977, %v2159
      %v2228 = vadd.f32 %v1978, %v2164
      %v2229 = vadd.f32 %v1979, %v2169
      %v2230 = vadd.f32 %v1980, %v2174
      %v2231 = vadd.f32 %v1981, %v2179
      %v2232 = vadd.f32 %v1982, %v2184
      %v2233 = vadd.f32 %v1983, %v2189
      %v2234 = vadd.f32 %v1984, %v2194
      %v2235 = vadd.f32 %v1985, %v2199
      %v2236 = vadd.f32 %v1986, %v2204
      %v2237 = vadd.f32 %v1987, %v2209
      %v2238 = vadd.f32 %v1988, %v2214
      %v2239 = vadd.f32 %v1989, %v2219
      %v2240 = vld [vmem:[%s262 + $0x26] sm:$0xff]
      %v2241 = vld [vmem:[%s262 + $0x2e] sm:$0xff]
      %v2242 = vld [vmem:[%s262 + $0x36] sm:$0xff]
      %v2243 = vld [vmem:[%s262 + $0x3e] sm:$0xff]
      %v2244 = vld [vmem:[%s262 + $0x46] sm:$0xff]
      %v2245 = vld [vmem:[%s262 + $0x4e] sm:$0xff]
      %v2246 = vld [vmem:[%s262 + $0x56] sm:$0xff]
      %v2247 = vld [vmem:[%s262 + $0x5e] sm:$0xff]
      %v2248 = vld [vmem:[%s262 + $0x66] sm:$0xff]
      %v2249 = vld [vmem:[%s262 + $0x6e] sm:$0xff]
      %v2250 = vld [vmem:[%s262 + $0x76] sm:$0xff]
      %v2251 = vld [vmem:[%s262 + $0x7e] sm:$0xff]
      %v2252 = vld [vmem:[%s262 + $0x86] sm:$0xff]
      %v2253 = vld [vmem:[%s262 + $0x8e] sm:$0xff]
      %v2254 = vld [vmem:[%s262 + $0x96] sm:$0xff]
      %v2255 = vld [vmem:[%s262 + $0x9e] sm:$0xff]
      %v2256 = vld [vmem:[%s262 + $0xa6] sm:$0xff]
      %v2257 = vld [vmem:[%s262 + $0xae] sm:$0xff]
      %s2258 = scalar_lea.vmem %s1, 32
      %v2259 = vld [vmem:[%s2258] sm:$0xf]
      %v2261 = vsel %vm314, %v2240, 0
      %v2264 = vsel %vm314, %v2241, 0
      %v2267 = vsel %vm314, %v2242, 0
      %v2270 = vsel %vm314, %v2243, 0
      %v2273 = vsel %vm314, %v2244, 0
      %v2276 = vsel %vm314, %v2245, 0
      %v2279 = vsel %vm314, %v2246, 0
      %v2282 = vsel %vm314, %v2247, 0
      %v2285 = vsel %vm314, %v2248, 0
      %v2288 = vsel %vm314, %v2249, 0
      %v2291 = vsel %vm314, %v2250, 0
      %v2294 = vsel %vm314, %v2251, 0
      %v2297 = vsel %vm314, %v2252, 0
      %v2300 = vsel %vm314, %v2253, 0
      %v2303 = vsel %vm314, %v2254, 0
      %v2306 = vsel %vm314, %v2255, 0
      %v2309 = vsel %vm314, %v2256, 0
      %v2312 = vsel %vm314, %v2257, 0
      %v2315 = vsel %vm369, %v2259, 0
      %2317 = vmatprep.subr.mxu0 0.0
      %2318 = vmatpush1.msra.mxu0 %v2315
      %2319 = vmatprep.subr.mxu0 0.0
      %2320 = vmatpush1.msra.mxu0 0.0
      %2321 = vmatprep.subr.mxu0 0.0
      %2322 = vmatpush1.msra.mxu0 0.0
      %2323 = vmatprep.subr.mxu0 0.0
      %2324 = vmatpush1.msra.mxu0 0.0
      %2325 = vmatprep.subr.mxu0 0.0
      %2326 = vmatpush1.msra.mxu0 0.0
      %2327 = vmatprep.subr.mxu0 0.0
      %2328 = vmatpush1.msra.mxu0 0.0
      %2329 = vmatprep.subr.mxu0 0.0
      %2330 = vmatpush1.msra.mxu0 0.0
      %2331 = vmatprep.subr.mxu0 0.0
      %2332 = vmatpush1.msra.mxu0 0.0
      %2333 = vmatprep.subr.mxu0 0.0
      %2334 = vmatpush1.msra.mxu0 0.0
      %2335 = vmatprep.subr.mxu0 0.0
      %2336 = vmatpush1.msra.mxu0 0.0
      %2337 = vmatprep.subr.mxu0 0.0
      %2338 = vmatpush1.msra.mxu0 0.0
      %2339 = vmatprep.subr.mxu0 0.0
      %2340 = vmatpush1.msra.mxu0 0.0
      %2341 = vmatprep.subr.mxu0 0.0
      %2342 = vmatpush1.msra.mxu0 0.0
      %2343 = vmatprep.subr.mxu0 0.0
      %2344 = vmatpush1.msra.mxu0 0.0
      %2345 = vmatprep.subr.mxu0 0.0
      %2346 = vmatpush1.msra.mxu0 0.0
      %2347 = vmatprep.subr.mxu0 0.0
      %2348 = vmatpush1.msra.mxu0 0.0
      %2349 = vmatprep.subr.mxu0 0.0
      %2350 = vmatpush1.msra.mxu0 0.0
      %2351 = vmatprep.subr.mxu0 0.0
      %2352 = vmatpush1.msra.mxu0 0.0
      %2353 = vmatprep.subr.mxu0 0.0
      %2354 = vmatpush1.msra.mxu0 0.0
      %2355 = vmatprep.subr.mxu0 0.0
      %2356 = vmatpush1.msra.mxu0 0.0
      %2357 = vmatprep.subr.mxu0 0.0
      %2358 = vmatpush1.msra.mxu0 0.0
      %2359 = vmatprep.subr.mxu0 0.0
      %2360 = vmatpush1.msra.mxu0 0.0
      %2361 = vmatprep.subr.mxu0 0.0
      %2362 = vmatpush1.msra.mxu0 0.0
      %2363 = vmatprep.subr.mxu0 0.0
      %2364 = vmatpush1.msra.mxu0 0.0
      %2365 = vmatprep.subr.mxu0 0.0
      %2366 = vmatpush1.msra.mxu0 0.0
      %2367 = vmatprep.subr.mxu0 0.0
      %2368 = vmatpush1.msra.mxu0 0.0
      %2369 = vmatprep.subr.mxu0 0.0
      %2370 = vmatpush1.msra.mxu0 0.0
      %2371 = vmatprep.subr.mxu0 0.0
      %2372 = vmatpush1.msra.mxu0 0.0
      %2373 = vmatprep.subr.mxu0 0.0
      %2374 = vmatpush1.msra.mxu0 0.0
      %2375 = vmatprep.subr.mxu0 0.0
      %2376 = vmatpush1.msra.mxu0 0.0
      %2377 = vmatprep.subr.mxu0 0.0
      %2378 = vmatpush1.msra.mxu0 0.0
      %2379 = vmatprep.subr.mxu0 0.0
      %2380 = vmatpush1.msra.mxu0 0.0
      %2381 = vmatprep.mubr.f32.mxu0 0.0
      %2382 = vmatmul.mubr.f32.gmra.mrb[0].mxu0 %v2261
      %v2383 = vpop.f32.mrb[0].mxu0
      %v2384 = vadd.f32 0.0, %v2383
      %v2385 = vpop.f32.mrb[0].mxu0
      %2386 = vmatprep.mubr.f32.mxu0 0.0
      %2387 = vmatmul.mubr.f32.gmra.mrb[0].mxu0 %v2264
      %v2388 = vpop.f32.mrb[0].mxu0
      %v2389 = vadd.f32 0.0, %v2388
      %v2390 = vpop.f32.mrb[0].mxu0
      %2391 = vmatprep.mubr.f32.mxu0 0.0
      %2392 = vmatmul.mubr.f32.gmra.mrb[0].mxu0 %v2267
      %v2393 = vpop.f32.mrb[0].mxu0
      %v2394 = vadd.f32 0.0, %v2393
      %v2395 = vpop.f32.mrb[0].mxu0
      %2396 = vmatprep.mubr.f32.mxu0 0.0
      %2397 = vmatmul.mubr.f32.gmra.mrb[0].mxu0 %v2270
      %v2398 = vpop.f32.mrb[0].mxu0
      %v2399 = vadd.f32 0.0, %v2398
      %v2400 = vpop.f32.mrb[0].mxu0
      %2401 = vmatprep.mubr.f32.mxu0 0.0
      %2402 = vmatmul.mubr.f32.gmra.mrb[0].mxu0 %v2273
      %v2403 = vpop.f32.mrb[0].mxu0
      %v2404 = vadd.f32 0.0, %v2403
      %v2405 = vpop.f32.mrb[0].mxu0
      %2406 = vmatprep.mubr.f32.mxu0 0.0
      %2407 = vmatmul.mubr.f32.gmra.mrb[0].mxu0 %v2276
      %v2408 = vpop.f32.mrb[0].mxu0
      %v2409 = vadd.f32 0.0, %v2408
      %v2410 = vpop.f32.mrb[0].mxu0
      %2411 = vmatprep.mubr.f32.mxu0 0.0
      %2412 = vmatmul.mubr.f32.gmra.mrb[0].mxu0 %v2279
      %v2413 = vpop.f32.mrb[0].mxu0
      %v2414 = vadd.f32 0.0, %v2413
      %v2415 = vpop.f32.mrb[0].mxu0
      %2416 = vmatprep.mubr.f32.mxu0 0.0
      %2417 = vmatmul.mubr.f32.gmra.mrb[0].mxu0 %v2282
      %v2418 = vpop.f32.mrb[0].mxu0
      %v2419 = vadd.f32 0.0, %v2418
      %v2420 = vpop.f32.mrb[0].mxu0
      %2421 = vmatprep.mubr.f32.mxu0 0.0
      %2422 = vmatmul.mubr.f32.gmra.mrb[0].mxu0 %v2285
      %v2423 = vpop.f32.mrb[0].mxu0
      %v2424 = vadd.f32 0.0, %v2423
      %v2425 = vpop.f32.mrb[0].mxu0
      %2426 = vmatprep.mubr.f32.mxu0 0.0
      %2427 = vmatmul.mubr.f32.gmra.mrb[0].mxu0 %v2288
      %v2428 = vpop.f32.mrb[0].mxu0
      %v2429 = vadd.f32 0.0, %v2428
      %v2430 = vpop.f32.mrb[0].mxu0
      %2431 = vmatprep.mubr.f32.mxu0 0.0
      %2432 = vmatmul.mubr.f32.gmra.mrb[0].mxu0 %v2291
      %v2433 = vpop.f32.mrb[0].mxu0
      %v2434 = vadd.f32 0.0, %v2433
      %v2435 = vpop.f32.mrb[0].mxu0
      %2436 = vmatprep.mubr.f32.mxu0 0.0
      %2437 = vmatmul.mubr.f32.gmra.mrb[0].mxu0 %v2294
      %v2438 = vpop.f32.mrb[0].mxu0
      %v2439 = vadd.f32 0.0, %v2438
      %v2440 = vpop.f32.mrb[0].mxu0
      %2441 = vmatprep.mubr.f32.mxu0 0.0
      %2442 = vmatmul.mubr.f32.gmra.mrb[0].mxu0 %v2297
      %v2443 = vpop.f32.mrb[0].mxu0
      %v2444 = vadd.f32 0.0, %v2443
      %v2445 = vpop.f32.mrb[0].mxu0
      %2446 = vmatprep.mubr.f32.mxu0 0.0
      %2447 = vmatmul.mubr.f32.gmra.mrb[0].mxu0 %v2300
      %v2448 = vpop.f32.mrb[0].mxu0
      %v2449 = vadd.f32 0.0, %v2448
      %v2450 = vpop.f32.mrb[0].mxu0
      %2451 = vmatprep.mubr.f32.mxu0 0.0
      %2452 = vmatmul.mubr.f32.gmra.mrb[0].mxu0 %v2303
      %v2453 = vpop.f32.mrb[0].mxu0
      %v2454 = vadd.f32 0.0, %v2453
      %v2455 = vpop.f32.mrb[0].mxu0
      %2456 = vmatprep.mubr.f32.mxu0 0.0
      %2457 = vmatmul.mubr.f32.gmra.mrb[0].mxu0 %v2306
      %v2458 = vpop.f32.mrb[0].mxu0
      %v2459 = vadd.f32 0.0, %v2458
      %v2460 = vpop.f32.mrb[0].mxu0
      %2461 = vmatprep.mubr.f32.mxu0 0.0
      %2462 = vmatmul.mubr.f32.gmra.mrb[0].mxu0 %v2309
      %v2463 = vpop.f32.mrb[0].mxu0
      %v2464 = vadd.f32 0.0, %v2463
      %v2465 = vpop.f32.mrb[0].mxu0
      %2466 = vmatprep.mubr.f32.mxu0 0.0
      %2467 = vmatmul.mubr.f32.gmra.mrb[0].mxu0 %v2312
      %v2468 = vpop.f32.mrb[0].mxu0
      %v2469 = vadd.f32 0.0, %v2468
      %v2470 = vpop.f32.mrb[0].mxu0
      %2471 = vdwg.mxu0
      %v2472 = vadd.f32 %v2222, %v2384
      %v2473 = vadd.f32 %v2223, %v2389
      %v2474 = vadd.f32 %v2224, %v2394
      %v2475 = vadd.f32 %v2225, %v2399
      %v2476 = vadd.f32 %v2226, %v2404
      %v2477 = vadd.f32 %v2227, %v2409
      %v2478 = vadd.f32 %v2228, %v2414
      %v2479 = vadd.f32 %v2229, %v2419
      %v2480 = vadd.f32 %v2230, %v2424
      %v2481 = vadd.f32 %v2231, %v2429
      %v2482 = vadd.f32 %v2232, %v2434
      %v2483 = vadd.f32 %v2233, %v2439
      %v2484 = vadd.f32 %v2234, %v2444
      %v2485 = vadd.f32 %v2235, %v2449
      %v2486 = vadd.f32 %v2236, %v2454
      %v2487 = vadd.f32 %v2237, %v2459
      %v2488 = vadd.f32 %v2238, %v2464
      %v2489 = vadd.f32 %v2239, %v2469
      %v2490 = vld [vmem:[%s2] sm:$0x1]
      %v2492 = vlaneseq
      %v2493 = vshrl.u32 %v2492, 7
      %v2494 = vsub.s32 0, %v2493
      %v2495 = vrot.slane %v2490, %v2494
      %v2497 = vadd.f32 %v2472, %v2495
      %v2498 = vadd.f32 %v2473, %v2495
      %v2499 = vadd.f32 %v2474, %v2495
      %v2500 = vadd.f32 %v2475, %v2495
      %v2501 = vadd.f32 %v2476, %v2495
      %v2502 = vadd.f32 %v2477, %v2495
      %v2503 = vadd.f32 %v2478, %v2495
      %v2504 = vadd.f32 %v2479, %v2495
      %v2505 = vadd.f32 %v2480, %v2495
      %v2506 = vadd.f32 %v2481, %v2495
      %v2507 = vadd.f32 %v2482, %v2495
      %v2508 = vadd.f32 %v2483, %v2495
      %v2509 = vadd.f32 %v2484, %v2495
      %v2510 = vadd.f32 %v2485, %v2495
      %v2511 = vadd.f32 %v2486, %v2495
      %v2512 = vadd.f32 %v2487, %v2495
      %v2513 = vadd.f32 %v2488, %v2495
      %v2514 = vadd.f32 %v2489, %v2495
      %vm2515 = vcmp.ge.f32.partialorder %v2497, 0.0
      %vm2516 = vcmp.ge.f32.partialorder %v2498, 0.0
      %vm2517 = vcmp.ge.f32.partialorder %v2499, 0.0
      %vm2518 = vcmp.ge.f32.partialorder %v2500, 0.0
      %vm2519 = vcmp.ge.f32.partialorder %v2501, 0.0
      %vm2520 = vcmp.ge.f32.partialorder %v2502, 0.0
      %vm2521 = vcmp.ge.f32.partialorder %v2503, 0.0
      %vm2522 = vcmp.ge.f32.partialorder %v2504, 0.0
      %vm2523 = vcmp.ge.f32.partialorder %v2505, 0.0
      %vm2524 = vcmp.ge.f32.partialorder %v2506, 0.0
      %vm2525 = vcmp.ge.f32.partialorder %v2507, 0.0
      %vm2526 = vcmp.ge.f32.partialorder %v2508, 0.0
      %vm2527 = vcmp.ge.f32.partialorder %v2509, 0.0
      %vm2528 = vcmp.ge.f32.partialorder %v2510, 0.0
      %vm2529 = vcmp.ge.f32.partialorder %v2511, 0.0
      %vm2530 = vcmp.ge.f32.partialorder %v2512, 0.0
      %vm2531 = vcmp.ge.f32.partialorder %v2513, 0.0
      %vm2532 = vcmp.ge.f32.partialorder %v2514, 0.0
      %v2533 = vld [vmem:[%s3] sm:$0x1]
      %v2535 = vlaneseq
      %v2536 = vshrl.u32 %v2535, 7
      %v2537 = vsub.s32 0, %v2536
      %v2538 = vrot.slane %v2533, %v2537
      %v2540 = vmul.f32 %v2538, %v2497
      %v2541 = vmul.f32 %v2538, %v2498
      %v2542 = vmul.f32 %v2538, %v2499
      %v2543 = vmul.f32 %v2538, %v2500
      %v2544 = vmul.f32 %v2538, %v2501
      %v2545 = vmul.f32 %v2538, %v2502
      %v2546 = vmul.f32 %v2538, %v2503
      %v2547 = vmul.f32 %v2538, %v2504
      %v2548 = vmul.f32 %v2538, %v2505
      %v2549 = vmul.f32 %v2538, %v2506
      %v2550 = vmul.f32 %v2538, %v2507
      %v2551 = vmul.f32 %v2538, %v2508
      %v2552 = vmul.f32 %v2538, %v2509
      %v2553 = vmul.f32 %v2538, %v2510
      %v2554 = vmul.f32 %v2538, %v2511
      %v2555 = vmul.f32 %v2538, %v2512
      %v2556 = vmul.f32 %v2538, %v2513
      %v2557 = vmul.f32 %v2538, %v2514
      %v2558 = vsel %vm2515, %v2497, %v2540
      %v2559 = vsel %vm2516, %v2498, %v2541
      %v2560 = vsel %vm2517, %v2499, %v2542
      %v2561 = vsel %vm2518, %v2500, %v2543
      %v2562 = vsel %vm2519, %v2501, %v2544
      %v2563 = vsel %vm2520, %v2502, %v2545
      %v2564 = vsel %vm2521, %v2503, %v2546
      %v2565 = vsel %vm2522, %v2504, %v2547
      %v2566 = vsel %vm2523, %v2505, %v2548
      %v2567 = vsel %vm2524, %v2506, %v2549
      %v2568 = vsel %vm2525, %v2507, %v2550
      %v2569 = vsel %vm2526, %v2508, %v2551
      %v2570 = vsel %vm2527, %v2509, %v2552
      %v2571 = vsel %vm2528, %v2510, %v2553
      %v2572 = vsel %vm2529, %v2511, %v2554
      %v2573 = vsel %vm2530, %v2512, %v2555
      %v2574 = vsel %vm2531, %v2513, %v2556
      %v2575 = vsel %vm2532, %v2514, %v2557
      %v2576 = vld [vmem:[%s265] sm:$0x1]
      %v2578 = vlaneseq
      %v2579 = vshrl.u32 %v2578, 7
      %v2580 = vsub.s32 0, %v2579
      %v2581 = vrot.slane %v2576, %v2580
      %v2583 = vmul.f32 %v2558, %v2581
      %v2584 = vmul.f32 %v2559, %v2581
      %v2585 = vmul.f32 %v2560, %v2581
      %v2586 = vmul.f32 %v2561, %v2581
      %v2587 = vmul.f32 %v2562, %v2581
      %v2588 = vmul.f32 %v2563, %v2581
      %v2589 = vmul.f32 %v2564, %v2581
      %v2590 = vmul.f32 %v2565, %v2581
      %v2591 = vmul.f32 %v2566, %v2581
      %v2592 = vmul.f32 %v2567, %v2581
      %v2593 = vmul.f32 %v2568, %v2581
      %v2594 = vmul.f32 %v2569, %v2581
      %v2595 = vmul.f32 %v2570, %v2581
      %v2596 = vmul.f32 %v2571, %v2581
      %v2597 = vmul.f32 %v2572, %v2581
      %v2598 = vmul.f32 %v2573, %v2581
      %v2599 = vmul.f32 %v2574, %v2581
      %v2600 = vmul.f32 %v2575, %v2581
      %vm2601 = vcmask 64512
      %2602 = vst.msk [vmem:[%s274] sm:$0xff] %vm2601, %v2583
      %2603 = vst.msk [vmem:[%s274 + $0x8] sm:$0xff] %vm2601, %v2584
      %2604 = vst.msk [vmem:[%s274 + $0x10] sm:$0xff] %vm2601, %v2585
      %2605 = vst.msk [vmem:[%s274 + $0x18] sm:$0xff] %vm2601, %v2586
      %2606 = vst.msk [vmem:[%s274 + $0x20] sm:$0xff] %vm2601, %v2587
      %2607 = vst.msk [vmem:[%s274 + $0x28] sm:$0xff] %vm2601, %v2588
      %2608 = vst.msk [vmem:[%s274 + $0x30] sm:$0xff] %vm2601, %v2589
      %2609 = vst.msk [vmem:[%s274 + $0x38] sm:$0xff] %vm2601, %v2590
      %2610 = vst.msk [vmem:[%s274 + $0x40] sm:$0xff] %vm2601, %v2591
      %2611 = vst.msk [vmem:[%s274 + $0x48] sm:$0xff] %vm2601, %v2592
      %2612 = vst.msk [vmem:[%s274 + $0x50] sm:$0xff] %vm2601, %v2593
      %2613 = vst.msk [vmem:[%s274 + $0x58] sm:$0xff] %vm2601, %v2594
      %2614 = vst.msk [vmem:[%s274 + $0x60] sm:$0xff] %vm2601, %v2595
      %2615 = vst.msk [vmem:[%s274 + $0x68] sm:$0xff] %vm2601, %v2596
      %2616 = vst.msk [vmem:[%s274 + $0x70] sm:$0xff] %vm2601, %v2597
      %2617 = vst.msk [vmem:[%s274 + $0x78] sm:$0xff] %vm2601, %v2598
      %2618 = vst.msk [vmem:[%s274 + $0x80] sm:$0xff] %vm2601, %v2599
      %2619 = vst.msk [vmem:[%s274 + $0x88] sm:$0xff] %vm2601, %v2600
      %p2620 = scmp.lt.s32.totalorder %s20, 1
      %s2621 = scalar_select %p2620, %s20, 1
      %p2622 = scmp.lt.s32.totalorder %s21, 1
      %s2623 = scalar_select %p2622, %s21, 1
      %s2624 = smul.addr %s2623, 18
      %s2625 = smul.addr %s2621, 36
      %s2626 = sadd.s32 %s2624, %s2625
      %s2627 = smul.addr %s2626, 8
      %s2628 = scalar_lea.vmem %s5, %s2627
      // Predicated region
      $region41: #{tpu_custom_call.1} parent=39 // pred_check
        %p2629 = pneg %p165
      $region42: #{tpu_custom_call.1} parent=39 // pred_check_branch
        %2631 = sbr.rel (%p2629) target = $region44
      $region43: #{tpu_custom_call.1} parent=39 // pred_region
        _
      $region44: #{tpu_custom_call.1} parent=39 // pred_fallthru
        _
    $region40: #{tpu_custom_call.1} parent=5 // pred_fallthru
      _
    %p2632 = scmp.le.s32.totalorder 2, %s11
    // Predicated region
    $region45: #{tpu_custom_call.1} parent=5 // pred_check
      %p2633 = pneg %p2632
    $region46: #{tpu_custom_call.1} parent=5 // pred_check_branch
      %2635 = sbr.rel (%p2633) target = $region48
    $region47: #{tpu_custom_call.1} parent=5 // pred_region
      %s2636 = ssub.s32 %s11, 2
      // Predicated region
      $region49: #{tpu_custom_call.1} parent=47 // pred_check
        %p2637 = pneg %p171
      $region50: #{tpu_custom_call.1} parent=47 // pred_check_branch
        %2639 = sbr.rel (%p2637) target = $region52
      $region51: #{tpu_custom_call.1} parent=47 // pred_region
        %p2640 = scmp.lt.s32.totalorder %s22, 1
        %s2641 = scalar_select %p2640, %s22, 1
        %p2642 = scmp.lt.s32.totalorder %s23, 1
        %s2643 = scalar_select %p2642, %s23, 1
        %s2644 = smul.addr %s2643, 18
        %s2645 = smul.addr %s2641, 36
        %s2646 = sadd.s32 %s2644, %s2645
        %s2647 = smul.addr %s2646, 8
        %s2648 = scalar_lea.vmem %s5, %s2647
      $region52: #{tpu_custom_call.1} parent=47 // pred_fallthru
        _
    $region48: #{tpu_custom_call.1} parent=5 // pred_fallthru
      _
  $region6: #{tpu_custom_call.1} parent=0 // loop_footer
    %s15 = sadd.s32 1, %s11
  $region7: #{tpu_custom_call.1} parent=0 // loop_footer_branch
    %10 = sbr.rel target = $region3
  $region8: #{tpu_custom_call.1} parent=0 // loop_exit
    _

</llo_original>
